<compile_context>
chip_gen: v5e
topology: v5e:2x2
jax: 0.10.0
libtpu: 0.0.40
codegen_flags: <defaults>
</compile_context>

<pallas_src>
import functools

import jax
import jax.numpy as jnp
from jax.experimental import pallas as pl
from jax.experimental.pallas import tpu as pltpu

C_CH = 16          # in/out channels of both convs (fixed by the module)
PAD = 5            # single pad buffer large enough for both convs
N_TAPS = 9         # 3x3 taps per conv
E_LAMBDA = 1e-4
LRELU_SLOPE = 0.2


def _sigmoid(v):
    return 1.0 / (1.0 + jnp.exp(-v))


def sd3d_kernel(col_ref, w_ref, b_ref, o2_ref, o1_ref, o0_ref, *, HW):
    """One batch element per grid step.

    col_ref : (1, 2*9*C, HW)  im2col of zero-padded input (convA taps then
                              convB taps); channels on sublanes, spatial on lanes
    w_ref   : (2*C, 2*9*C)    block-diagonal fused conv weights [wA 0; 0 wB]
    b_ref   : (2*C, 1)        [bA; bB]
    o*_ref  : (1, C, HW)      M2_2, M2_1, M2_0 (lane-dense outputs)
    """
    col = col_ref[0]                                   # (288, HW) f32

    # Fused conv A + conv B: single MXU matmul, lane-dense (32, HW) result.
    acc = jnp.dot(w_ref[...], col, preferred_element_type=jnp.float32)
    acc = acc + b_ref[...]                             # (32, HW) + (32, 1)

    a = jnp.where(acc >= 0, acc, LRELU_SLOPE * acc)    # LeakyReLU(0.2)
    A1 = a[:C_CH, :]                                   # conv A branch
    A2 = a[C_CH:, :]                                   # conv B branch
    guided = _sigmoid(A1 - A2)

    # Unpadded x == centre tap (kh=kw=1) of conv A inside the im2col tensor.
    x = col_ref[0, 4 * C_CH:5 * C_CH, :]               # (C, HW)
    detail = x * guided
    structure = x - detail

    inv_n = 1.0 / float(HW - 1)

    def simam(t):
        # Per-channel spatial statistics: spatial = lane axis (axis 1).
        mu = jnp.mean(t, axis=1, keepdims=True)        # (C, 1)
        d = (t - mu) ** 2
        s = jnp.sum(d, axis=1, keepdims=True)          # (C, 1)
        inv = 1.0 / (4.0 * (s * inv_n + E_LAMBDA))     # hoisted per-channel recip
        y = d * inv + 0.5
        return _sigmoid(y)

    M2_0 = simam(structure) * detail
    M2_1 = simam(M2_0) * detail
    M2_2 = simam(M2_1) * detail

    o0_ref[0] = M2_0
    o1_ref[0] = M2_1
    o2_ref[0] = M2_2


def _build_im2col(x_nchw):
    """(B, C, H, W) -> (B, 18*C, H*W): 9 convA taps then 9 convB taps."""
    B, C, H, W = x_nchw.shape
    xp = jnp.pad(x_nchw, ((0, 0), (0, 0), (PAD, PAD), (PAD, PAD)))
    taps = []
    for kh in range(3):          # conv A: kernel 3, dilation 1, padding 1
        for kw in range(3):
            taps.append(xp[:, :, PAD - 1 + kh:PAD - 1 + kh + H,
                           PAD - 1 + kw:PAD - 1 + kw + W])
    for kh in range(3):          # conv B: kernel 3, dilation 5, padding 5
        for kw in range(3):
            taps.append(xp[:, :, 5 * kh:5 * kh + H,
                           5 * kw:5 * kw + W])
    col = jnp.concatenate(taps, axis=1)                # (B, 18*C, H, W)
    return col.reshape(B, 2 * N_TAPS * C, H * W)


def sd3d_forward(x_nchw, wA, bA, wB, bB):
    """Pallas implementation. Returns (M2_2, M2_1, M2_0) in NCHW."""
    B, Cin, H, W = x_nchw.shape
    assert Cin == C_CH
    HW = H * W
    K = 2 * N_TAPS * Cin                               # 288

    x_f32 = x_nchw.astype(jnp.float32)
    col = _build_im2col(x_f32)                         # (B, 288, HW)

    # Block-diagonal fused weight: rows 0:16 -> convA, rows 16:32 -> convB.
    # wA/wB are HWIO (3,3,Cin,Cout); flatten taps*Cin along rows.
    wA_m = wA.reshape(N_TAPS * Cin, Cin).T.astype(jnp.float32)   # (16, 144)
    wB_m = wB.reshape(N_TAPS * Cin, Cin).T.astype(jnp.float32)   # (16, 144)
    zeros = jnp.zeros((Cin, N_TAPS * Cin), jnp.float32)
    w2 = jnp.concatenate(
        [jnp.concatenate([wA_m, zeros], axis=1),
         jnp.concatenate([zeros, wB_m], axis=1)], axis=0)        # (32, 288)
    b2 = jnp.concatenate(
        [bA.reshape(-1), bB.reshape(-1)]).astype(jnp.float32).reshape(2 * Cin, 1)

    kernel = functools.partial(sd3d_kernel, HW=HW)
    out_shape = tuple(jax.ShapeDtypeStruct((B, Cin, HW), jnp.float32)
                      for _ in range(3))

    grid_spec = pltpu.PrefetchScalarGridSpec(
        num_scalar_prefetch=0,
        grid=(B,),
        in_specs=[
            pl.BlockSpec((1, K, HW), lambda b: (b, 0, 0)),
            pl.BlockSpec((2 * Cin, K), lambda b: (0, 0)),
            pl.BlockSpec((2 * Cin, 1), lambda b: (0, 0)),
        ],
        out_specs=tuple(pl.BlockSpec((1, Cin, HW), lambda b: (b, 0, 0))
                        for _ in range(3)),
    )

    M2_2, M2_1, M2_0 = pl.pallas_call(
        kernel,
        out_shape=out_shape,
        grid_spec=grid_spec,
        compiler_params=pltpu.CompilerParams(
            # Batch elements are independent -> lets v7x split them across its
            # two TensorCores (no effect on v5e/v6e).
            dimension_semantics=("parallel",)),
    )(col, w2, b2)

    def to_nchw(t):
        return t.reshape(B, Cin, H, W)                 # plain reshape, no transpose

    return to_nchw(M2_2), to_nchw(M2_1), to_nchw(M2_0)


def sd3d_reference(x_nchw, wA, bA, wB, bB):
    """Pure-JAX reference mirroring the PyTorch forward (for validation)."""
    x = jnp.transpose(x_nchw, (0, 2, 3, 1)).astype(jnp.float32)

    def conv(inp, w, b, dil):
        out = jax.lax.conv_general_dilated(
            inp, w, window_strides=(1, 1),
            padding=((dil, dil), (dil, dil)),
            rhs_dilation=(dil, dil),
            dimension_numbers=("NHWC", "HWIO", "NHWC"))
        return out + b.reshape(1, 1, 1, -1)

    def lrelu(v):
        return jnp.where(v >= 0, v, LRELU_SLOPE * v)

    A1 = lrelu(conv(x, wA, bA, 1))
    A2 = lrelu(conv(x, wB, bB, 5))
    guided = jax.nn.sigmoid(A1 - A2)
    detail = x * guided
    structure = x - detail

    def simam(t):
        n = t.shape[1] * t.shape[2] - 1
        mu = jnp.mean(t, axis=(1, 2), keepdims=True)
        d = (t - mu) ** 2
        s = jnp.sum(d, axis=(1, 2), keepdims=True)
        y = d / (4.0 * (s / n + E_LAMBDA)) + 0.5
        return jax.nn.sigmoid(y)

    M2_0 = simam(structure) * detail
    M2_1 = simam(M2_0) * detail
    M2_2 = simam(M2_1) * detail
    to = lambda t: jnp.transpose(t, (0, 3, 1, 2))
    return to(M2_2), to(M2_1), to(M2_0)


if __name__ == "__main__":
    key = jax.random.PRNGKey(0)
    kx, kwa, kba, kwb, kbb = jax.random.split(key, 5)

    B, H, W = 2, 16, 16
    x = jax.random.normal(kx, (B, C_CH, H, W), jnp.float32)

    # Deterministic synthetic conv params (HWIO layout), roughly kaiming-scaled.
    fan_in = C_CH * 3 * 3
    scale = 1.0 / (fan_in ** 0.5)
    wA = jax.random.normal(kwa, (3, 3, C_CH, C_CH), jnp.float32) * scale
    bA = jax.random.normal(kba, (1, C_CH), jnp.float32) * 0.05
    wB = jax.random.normal(kwb, (3, 3, C_CH, C_CH), jnp.float32) * scale
    bB = jax.random.normal(kbb, (1, C_CH), jnp.float32) * 0.05

    outs = sd3d_forward(x, wA, bA, wB, bB)
    outs = jax.block_until_ready(outs)

    refs = sd3d_reference(x, wA, bA, wB, bB)
    for o, r in zip(outs, refs):
        assert o.shape == r.shape, (o.shape, r.shape)
        assert jnp.allclose(o, r, atol=2e-3, rtol=2e-3), float(
            jnp.max(jnp.abs(o - r)))

    print("KERNEL_OK")
</pallas_src>

<mosaic_0001>
module attributes {stable_mosaic.version = 11 : i64} {
  func.func @sd3d_kernel(%arg0: i32, %arg1: memref<1x288x256xf32, #tpu.memory_space<vmem>>, %arg2: memref<32x288xf32, #tpu.memory_space<vmem>>, %arg3: memref<32x1xf32, #tpu.memory_space<vmem>>, %arg4: memref<1x16x256xf32, #tpu.memory_space<vmem>>, %arg5: memref<1x16x256xf32, #tpu.memory_space<vmem>>, %arg6: memref<1x16x256xf32, #tpu.memory_space<vmem>>) attributes {dimension_semantics = [#tpu.dimension_semantics<parallel>], iteration_bounds = array<i64: 2>, scalar_prefetch = 0 : i64, scratch_operands = 0 : i64, tpu.core_type = #tpu.core_type<tc>, window_params = [{transform_indices = @transform_0, window_bounds = array<i64: 1, 288, 256>}, {pipeline_mode = #tpu.pipeline_mode<synchronous>, transform_indices = @transform_1, window_bounds = array<i64: 32, 288>}, {pipeline_mode = #tpu.pipeline_mode<synchronous>, transform_indices = @transform_2, window_bounds = array<i64: 32, 1>}, {transform_indices = @transform_3, window_bounds = array<i64: 1, 16, 256>}, {transform_indices = @transform_4, window_bounds = array<i64: 1, 16, 256>}, {transform_indices = @transform_5, window_bounds = array<i64: 1, 16, 256>}]} {
    %c0 = arith.constant 0 : index
    %c0_0 = arith.constant 0 : index
    %c0_1 = arith.constant 0 : index
    %0 = vector.load %arg1[%c0, %c0_0, %c0_1] : memref<1x288x256xf32, #tpu.memory_space<vmem>>, vector<1x288x256xf32>
    %1 = vector.shape_cast %0 : vector<1x288x256xf32> to vector<288x256xf32>
    %c0_2 = arith.constant 0 : index
    %c0_3 = arith.constant 0 : index
    %2 = vector.load %arg2[%c0_2, %c0_3] : memref<32x288xf32, #tpu.memory_space<vmem>>, vector<32x288xf32>
    %cst = arith.constant dense<0.000000e+00> : vector<32x256xf32>
    %3 = tpu.matmul %2, %1, %cst {dimension_numbers = #tpu.dot_dimension_numbers<[1], [0], [0], [1], [0, 0, 1, 1], [], []>} : vector<32x288xf32>, vector<288x256xf32>, vector<32x256xf32> -> vector<32x256xf32>
    %c0_4 = arith.constant 0 : index
    %c0_5 = arith.constant 0 : index
    %4 = vector.load %arg3[%c0_4, %c0_5] : memref<32x1xf32, #tpu.memory_space<vmem>>, vector<32x1xf32>
    %5 = vector.broadcast %4 : vector<32x1xf32> to vector<32x256xf32>
    %6 = arith.addf %3, %5 : vector<32x256xf32>
    %cst_6 = arith.constant 0.000000e+00 : f32
    %7 = vector.broadcast %cst_6 : f32 to vector<32x256xf32>
    %8 = arith.cmpf oge, %6, %7 : vector<32x256xf32>
    %cst_7 = arith.constant 2.000000e-01 : f32
    %9 = vector.broadcast %cst_7 : f32 to vector<32x256xf32>
    %10 = arith.mulf %9, %6 : vector<32x256xf32>
    %11 = arith.select %8, %6, %10 : vector<32x256xi1>, vector<32x256xf32>
    %12 = vector.extract_strided_slice %11 {offsets = [0, 0], sizes = [16, 256], strides = [1, 1]} : vector<32x256xf32> to vector<16x256xf32>
    %13 = vector.extract_strided_slice %11 {offsets = [16, 0], sizes = [16, 256], strides = [1, 1]} : vector<32x256xf32> to vector<16x256xf32>
    %14 = arith.subf %12, %13 : vector<16x256xf32>
    %cst_8 = arith.constant 0.000000e+00 : f32
    %15 = vector.broadcast %cst_8 : f32 to vector<16x256xf32>
    %16 = arith.subf %15, %14 : vector<16x256xf32>
    %17 = math.exp %16 : vector<16x256xf32>
    %cst_9 = arith.constant 1.000000e+00 : f32
    %18 = vector.broadcast %cst_9 : f32 to vector<16x256xf32>
    %19 = arith.addf %18, %17 : vector<16x256xf32>
    %cst_10 = arith.constant 1.000000e+00 : f32
    %20 = vector.broadcast %cst_10 : f32 to vector<16x256xf32>
    %21 = arith.divf %20, %19 : vector<16x256xf32>
    %c0_11 = arith.constant 0 : index
    %c64 = arith.constant 64 : index
    %c0_12 = arith.constant 0 : index
    %22 = vector.load %arg1[%c0_11, %c64, %c0_12] : memref<1x288x256xf32, #tpu.memory_space<vmem>>, vector<1x16x256xf32>
    %23 = vector.shape_cast %22 : vector<1x16x256xf32> to vector<16x256xf32>
    %24 = arith.mulf %23, %21 : vector<16x256xf32>
    %25 = arith.subf %23, %24 : vector<16x256xf32>
    %cst_13 = arith.constant dense<0.000000e+00> : vector<16xf32>
    %26 = vector.multi_reduction <add>, %25, %cst_13 [1] : vector<16x256xf32> to vector<16xf32>
    %27 = vector.shape_cast %26 : vector<16xf32> to vector<16x1xf32>
    %cst_14 = arith.constant 2.560000e+02 : f32
    %28 = vector.broadcast %cst_14 : f32 to vector<16x1xf32>
    %29 = arith.divf %27, %28 : vector<16x1xf32>
    %30 = vector.broadcast %29 : vector<16x1xf32> to vector<16x256xf32>
    %31 = arith.subf %25, %30 : vector<16x256xf32>
    %32 = arith.mulf %31, %31 : vector<16x256xf32>
    %cst_15 = arith.constant dense<0.000000e+00> : vector<16xf32>
    %33 = vector.multi_reduction <add>, %32, %cst_15 [1] : vector<16x256xf32> to vector<16xf32>
    %34 = vector.shape_cast %33 : vector<16xf32> to vector<16x1xf32>
    %cst_16 = arith.constant 0.00392156886 : f32
    %35 = vector.broadcast %cst_16 : f32 to vector<16x1xf32>
    %36 = arith.mulf %34, %35 : vector<16x1xf32>
    %cst_17 = arith.constant 9.99999974E-5 : f32
    %37 = vector.broadcast %cst_17 : f32 to vector<16x1xf32>
    %38 = arith.addf %36, %37 : vector<16x1xf32>
    %cst_18 = arith.constant 4.000000e+00 : f32
    %39 = vector.broadcast %cst_18 : f32 to vector<16x1xf32>
    %40 = arith.mulf %39, %38 : vector<16x1xf32>
    %cst_19 = arith.constant 1.000000e+00 : f32
    %41 = vector.broadcast %cst_19 : f32 to vector<16x1xf32>
    %42 = arith.divf %41, %40 : vector<16x1xf32>
    %43 = vector.broadcast %42 : vector<16x1xf32> to vector<16x256xf32>
    %44 = arith.mulf %32, %43 : vector<16x256xf32>
    %cst_20 = arith.constant 5.000000e-01 : f32
    %45 = vector.broadcast %cst_20 : f32 to vector<16x256xf32>
    %46 = arith.addf %44, %45 : vector<16x256xf32>
    %cst_21 = arith.constant 0.000000e+00 : f32
    %47 = vector.broadcast %cst_21 : f32 to vector<16x256xf32>
    %48 = arith.subf %47, %46 : vector<16x256xf32>
    %49 = math.exp %48 : vector<16x256xf32>
    %cst_22 = arith.constant 1.000000e+00 : f32
    %50 = vector.broadcast %cst_22 : f32 to vector<16x256xf32>
    %51 = arith.addf %50, %49 : vector<16x256xf32>
    %cst_23 = arith.constant 1.000000e+00 : f32
    %52 = vector.broadcast %cst_23 : f32 to vector<16x256xf32>
    %53 = arith.divf %52, %51 : vector<16x256xf32>
    %54 = arith.mulf %53, %24 : vector<16x256xf32>
    %cst_24 = arith.constant dense<0.000000e+00> : vector<16xf32>
    %55 = vector.multi_reduction <add>, %54, %cst_24 [1] : vector<16x256xf32> to vector<16xf32>
    %56 = vector.shape_cast %55 : vector<16xf32> to vector<16x1xf32>
    %cst_25 = arith.constant 2.560000e+02 : f32
    %57 = vector.broadcast %cst_25 : f32 to vector<16x1xf32>
    %58 = arith.divf %56, %57 : vector<16x1xf32>
    %59 = vector.broadcast %58 : vector<16x1xf32> to vector<16x256xf32>
    %60 = arith.subf %54, %59 : vector<16x256xf32>
    %61 = arith.mulf %60, %60 : vector<16x256xf32>
    %cst_26 = arith.constant dense<0.000000e+00> : vector<16xf32>
    %62 = vector.multi_reduction <add>, %61, %cst_26 [1] : vector<16x256xf32> to vector<16xf32>
    %63 = vector.shape_cast %62 : vector<16xf32> to vector<16x1xf32>
    %cst_27 = arith.constant 0.00392156886 : f32
    %64 = vector.broadcast %cst_27 : f32 to vector<16x1xf32>
    %65 = arith.mulf %63, %64 : vector<16x1xf32>
    %cst_28 = arith.constant 9.99999974E-5 : f32
    %66 = vector.broadcast %cst_28 : f32 to vector<16x1xf32>
    %67 = arith.addf %65, %66 : vector<16x1xf32>
    %cst_29 = arith.constant 4.000000e+00 : f32
    %68 = vector.broadcast %cst_29 : f32 to vector<16x1xf32>
    %69 = arith.mulf %68, %67 : vector<16x1xf32>
    %cst_30 = arith.constant 1.000000e+00 : f32
    %70 = vector.broadcast %cst_30 : f32 to vector<16x1xf32>
    %71 = arith.divf %70, %69 : vector<16x1xf32>
    %72 = vector.broadcast %71 : vector<16x1xf32> to vector<16x256xf32>
    %73 = arith.mulf %61, %72 : vector<16x256xf32>
    %cst_31 = arith.constant 5.000000e-01 : f32
    %74 = vector.broadcast %cst_31 : f32 to vector<16x256xf32>
    %75 = arith.addf %73, %74 : vector<16x256xf32>
    %cst_32 = arith.constant 0.000000e+00 : f32
    %76 = vector.broadcast %cst_32 : f32 to vector<16x256xf32>
    %77 = arith.subf %76, %75 : vector<16x256xf32>
    %78 = math.exp %77 : vector<16x256xf32>
    %cst_33 = arith.constant 1.000000e+00 : f32
    %79 = vector.broadcast %cst_33 : f32 to vector<16x256xf32>
    %80 = arith.addf %79, %78 : vector<16x256xf32>
    %cst_34 = arith.constant 1.000000e+00 : f32
    %81 = vector.broadcast %cst_34 : f32 to vector<16x256xf32>
    %82 = arith.divf %81, %80 : vector<16x256xf32>
    %83 = arith.mulf %82, %24 : vector<16x256xf32>
    %cst_35 = arith.constant dense<0.000000e+00> : vector<16xf32>
    %84 = vector.multi_reduction <add>, %83, %cst_35 [1] : vector<16x256xf32> to vector<16xf32>
    %85 = vector.shape_cast %84 : vector<16xf32> to vector<16x1xf32>
    %cst_36 = arith.constant 2.560000e+02 : f32
    %86 = vector.broadcast %cst_36 : f32 to vector<16x1xf32>
    %87 = arith.divf %85, %86 : vector<16x1xf32>
    %88 = vector.broadcast %87 : vector<16x1xf32> to vector<16x256xf32>
    %89 = arith.subf %83, %88 : vector<16x256xf32>
    %90 = arith.mulf %89, %89 : vector<16x256xf32>
    %cst_37 = arith.constant dense<0.000000e+00> : vector<16xf32>
    %91 = vector.multi_reduction <add>, %90, %cst_37 [1] : vector<16x256xf32> to vector<16xf32>
    %92 = vector.shape_cast %91 : vector<16xf32> to vector<16x1xf32>
    %cst_38 = arith.constant 0.00392156886 : f32
    %93 = vector.broadcast %cst_38 : f32 to vector<16x1xf32>
    %94 = arith.mulf %92, %93 : vector<16x1xf32>
    %cst_39 = arith.constant 9.99999974E-5 : f32
    %95 = vector.broadcast %cst_39 : f32 to vector<16x1xf32>
    %96 = arith.addf %94, %95 : vector<16x1xf32>
    %cst_40 = arith.constant 4.000000e+00 : f32
    %97 = vector.broadcast %cst_40 : f32 to vector<16x1xf32>
    %98 = arith.mulf %97, %96 : vector<16x1xf32>
    %cst_41 = arith.constant 1.000000e+00 : f32
    %99 = vector.broadcast %cst_41 : f32 to vector<16x1xf32>
    %100 = arith.divf %99, %98 : vector<16x1xf32>
    %101 = vector.broadcast %100 : vector<16x1xf32> to vector<16x256xf32>
    %102 = arith.mulf %90, %101 : vector<16x256xf32>
    %cst_42 = arith.constant 5.000000e-01 : f32
    %103 = vector.broadcast %cst_42 : f32 to vector<16x256xf32>
    %104 = arith.addf %102, %103 : vector<16x256xf32>
    %cst_43 = arith.constant 0.000000e+00 : f32
    %105 = vector.broadcast %cst_43 : f32 to vector<16x256xf32>
    %106 = arith.subf %105, %104 : vector<16x256xf32>
    %107 = math.exp %106 : vector<16x256xf32>
    %cst_44 = arith.constant 1.000000e+00 : f32
    %108 = vector.broadcast %cst_44 : f32 to vector<16x256xf32>
    %109 = arith.addf %108, %107 : vector<16x256xf32>
    %cst_45 = arith.constant 1.000000e+00 : f32
    %110 = vector.broadcast %cst_45 : f32 to vector<16x256xf32>
    %111 = arith.divf %110, %109 : vector<16x256xf32>
    %112 = arith.mulf %111, %24 : vector<16x256xf32>
    %c0_46 = arith.constant 0 : index
    %c0_47 = arith.constant 0 : index
    %c0_48 = arith.constant 0 : index
    %113 = vector.load %arg6[%c0_46, %c0_47, %c0_48] : memref<1x16x256xf32, #tpu.memory_space<vmem>>, vector<1x16x256xf32>
    %114 = vector.shape_cast %113 : vector<1x16x256xf32> to vector<16x256xf32>
    %115 = vector.shape_cast %54 : vector<16x256xf32> to vector<1x16x256xf32>
    tpu.vector_store %arg6[%c0_46, %c0_47, %c0_48], %115 {strides = array<i32>} : memref<1x16x256xf32, #tpu.memory_space<vmem>>, vector<1x16x256xf32>,
    %c0_49 = arith.constant 0 : index
    %c0_50 = arith.constant 0 : index
    %c0_51 = arith.constant 0 : index
    %116 = vector.load %arg5[%c0_49, %c0_50, %c0_51] : memref<1x16x256xf32, #tpu.memory_space<vmem>>, vector<1x16x256xf32>
    %117 = vector.shape_cast %116 : vector<1x16x256xf32> to vector<16x256xf32>
    %118 = vector.shape_cast %83 : vector<16x256xf32> to vector<1x16x256xf32>
    tpu.vector_store %arg5[%c0_49, %c0_50, %c0_51], %118 {strides = array<i32>} : memref<1x16x256xf32, #tpu.memory_space<vmem>>, vector<1x16x256xf32>,
    %c0_52 = arith.constant 0 : index
    %c0_53 = arith.constant 0 : index
    %c0_54 = arith.constant 0 : index
    %119 = vector.load %arg4[%c0_52, %c0_53, %c0_54] : memref<1x16x256xf32, #tpu.memory_space<vmem>>, vector<1x16x256xf32>
    %120 = vector.shape_cast %119 : vector<1x16x256xf32> to vector<16x256xf32>
    %121 = vector.shape_cast %112 : vector<16x256xf32> to vector<1x16x256xf32>
    tpu.vector_store %arg4[%c0_52, %c0_53, %c0_54], %121 {strides = array<i32>} : memref<1x16x256xf32, #tpu.memory_space<vmem>>, vector<1x16x256xf32>,
    return
  }
  func.func @transform_0(%arg0: i32) -> (i32, i32, i32) {
    %c0_i32 = arith.constant 0 : i32
    %c0_i32_0 = arith.constant 0 : i32
    %c0_i32_1 = arith.constant 0 : i32
    return %arg0, %c0_i32, %c0_i32_0 : i32, i32, i32
  }
  func.func @transform_1(%arg0: i32) -> (i32, i32) {
    %c0_i32 = arith.constant 0 : i32
    %c0_i32_0 = arith.constant 0 : i32
    %c0_i32_1 = arith.constant 0 : i32
    return %c0_i32, %c0_i32_0 : i32, i32
  }
  func.func @transform_2(%arg0: i32) -> (i32, i32) {
    %c0_i32 = arith.constant 0 : i32
    %c0_i32_0 = arith.constant 0 : i32
    %c0_i32_1 = arith.constant 0 : i32
    return %c0_i32, %c0_i32_0 : i32, i32
  }
  func.func @transform_3(%arg0: i32) -> (i32, i32, i32) {
    %c0_i32 = arith.constant 0 : i32
    %c0_i32_0 = arith.constant 0 : i32
    %c0_i32_1 = arith.constant 0 : i32
    return %arg0, %c0_i32, %c0_i32_0 : i32, i32, i32
  }
  func.func @transform_4(%arg0: i32) -> (i32, i32, i32) {
    %c0_i32 = arith.constant 0 : i32
    %c0_i32_0 = arith.constant 0 : i32
    %c0_i32_1 = arith.constant 0 : i32
    return %arg0, %c0_i32, %c0_i32_0 : i32, i32, i32
  }
  func.func @transform_5(%arg0: i32) -> (i32, i32, i32) {
    %c0_i32 = arith.constant 0 : i32
    %c0_i32_0 = arith.constant 0 : i32
    %c0_i32_1 = arith.constant 0 : i32
    return %arg0, %c0_i32, %c0_i32_0 : i32, i32, i32
  }
}

</mosaic_0001>

<llo_original>
// kernel: tpu_custom_call.1
$region0: #{tpu_custom_call.1}
  #allocation0 [shape = 'u32[]', space=smem, size = 0x4, offset = 0x4, fixed_abs, tag = 'smem constant byte address 0x4 - core index']
  #allocation1 [shape = 'u32[72,128]{1,0:T(1,128)}', space=vmem, size = 0x9000, scoped, tag = 'internal scratch']
  %s0 = inlined_call_operand.hbm [shape: f32[2,288,256], index: 0, kind: input, shape index: {}]
  %s1 = inlined_call_operand.hbm [shape: f32[32,288], index: 1, kind: input, shape index: {}]
  %s2 = inlined_call_operand.vmem [shape: f32[32,1], index: 2, kind: input, shape index: {}]
  %s3 = inlined_call_operand.hbm [shape: f32[2,16,256], index: 3, kind: output, shape index: {0}]
  %s4 = inlined_call_operand.hbm [shape: f32[2,16,256], index: 4, kind: output, shape index: {1}]
  %s5 = inlined_call_operand.hbm [shape: f32[2,16,256], index: 5, kind: output, shape index: {2}]
  %6 = xla_tuple %s3, %s4, %s5
  %s7 = sld [smem:[#allocation0]]
  $region69: #{tpu_custom_call.1} parent=0
    _
  %s9 = ssub.s32 1, %s7
  %s10 = scalar_select 0, %s9, %s7
  $region1: #{tpu_custom_call.1} parent=0
    #allocation2 [shape = 'u8[589824]{0}', space=vmem, size = 0x90000, scoped, tag = 'input window, operand 0']
    #allocation3 [shape = 's32[2]{0}', space=sflag, size = 0x8, scoped, tag = 'scoped memory for tpu_custom_call.1']
    #allocation4 [shape = 's32[2]{0}', space=sflag, size = 0x8, scoped, tag = 'scoped memory for tpu_custom_call.1']
    #allocation5 [shape = 'u8[49152]{0}', space=vmem, size = 0xc000, scoped, tag = 'input window, operand 1, single buffered']
    #allocation6 [shape = 's32[1]{0}', space=sflag, size = 0x4, scoped, tag = 'scoped memory for tpu_custom_call.1']
    #allocation7 [shape = 'u8[32768]{0}', space=vmem, size = 0x8000, scoped, tag = 'output window, operand 0']
    #allocation8 [shape = 'u8[32768]{0}', space=vmem, size = 0x8000, scoped, tag = 'output window, operand 1']
    #allocation9 [shape = 's32[2]{0}', space=sflag, size = 0x8, scoped, tag = 'scoped memory for tpu_custom_call.1']
    #allocation10 [shape = 'u8[32768]{0}', space=vmem, size = 0x8000, scoped, tag = 'output window, operand 2']
    %11 = vsyncpa [#allocation3], 0
    %s12 = scalar_lea.sflag [#allocation3], 1
    %13 = vsyncpa %s12, 0
    %14 = vsyncpa [#allocation6], 0
    %15 = vsyncpa [#allocation4], 0
    %s16 = scalar_lea.sflag [#allocation4], 1
    %17 = vsyncpa %s16, 0
    %18 = vsyncpa [#allocation9], 0
    %s19 = scalar_lea.sflag [#allocation9], 1
    %20 = vsyncpa %s19, 0
    loop: start=0, step=1, limit=4
    $region2: #{tpu_custom_call.1} parent=1 // loop_pre_header
      _
    $region3: #{tpu_custom_call.1} parent=1 // loop_header
      %s22 = sphi 0, %s26
      %p23 = scmp.ge.s32.totalorder %s22, 4
      %s32 = sphi 0, %s34
      %s35 = sphi 0, %s32
      %s36 = sphi 0, %s35
      %s52 = sphi 0, %s36
      %s56 = sphi 0, %s56
      %s58 = sphi 0, %s56
      %s59 = sphi 0, %s58
      %s73 = sphi 0, %s59
      %s77 = sphi 0, %s77
      %s79 = sphi 0, %s77
      %s80 = sphi 0, %s79
      %s94 = sphi 0, %s80
      %s100 = sphi 0, %s102
      %s103 = sphi 0, %s100
      %s104 = sphi 0, %s103
      %s120 = sphi 0, %s104
      %s126 = sphi 0, %s128
      %s129 = sphi 0, %s126
      %s130 = sphi 0, %s129
      %s146 = sphi 0, %s130
      %s152 = sphi 0, %s154
      %s155 = sphi 0, %s152
      %s156 = sphi 0, %s155
      %s172 = sphi 0, %s156
    $region4: #{tpu_custom_call.1} parent=1 // loop_header_branch
      %25 = sbr.rel (%p23) target = $region8
    $region5: #{tpu_custom_call.1} parent=1 // loop_body
      %s27 = ssub.s32 %s22, 1
      %s28 = ssub.s32 %s22, 2
      %s29 = sadd.s32 %s22, 1
      %s30 = ssub.s32 %s22, %s29
      %p31 = scmp.eq.s32.totalorder %s30, 0
      %s33 = sadd.s32 %s32, 1
      %s34 = scalar_select %p31, %s32, %s33
      %p37 = pneg %p31
      %p38 = scmp.eq.s32.totalorder %s22, 1
      %p39 = por %p37, %p38
      %p40 = scmp.ne.s32.totalorder %s32, %s35
      %p41 = scmp.eq.s32.totalorder %s22, 0
      %p42 = por %p40, %p41
      %p43 = scmp.ne.s32.totalorder %s32, %s35
      %p44 = scmp.eq.s32.totalorder %s27, 1
      %p45 = por %p43, %p44
      %p46 = scmp.ne.s32.totalorder %s35, %s36
      %p47 = scmp.eq.s32.totalorder %s27, 0
      %p48 = por %p46, %p47
      %p49 = scmp.ne.s32.totalorder %s35, %s36
      %p50 = scmp.eq.s32.totalorder %s28, 1
      %p51 = por %p49, %p50
      %p53 = scmp.ne.s32.totalorder %s36, %s52
      %p54 = scmp.eq.s32.totalorder %s28, 0
      %p55 = por %p53, %p54
      %s57 = sadd.s32 %s56, 1
      %p60 = scmp.eq.s32.totalorder %s22, 1
      %p61 = scmp.ne.s32.totalorder %s56, %s58
      %p62 = scmp.eq.s32.totalorder %s22, 0
      %p63 = por %p61, %p62
      %p64 = scmp.ne.s32.totalorder %s56, %s58
      %p65 = scmp.eq.s32.totalorder %s27, 1
      %p66 = por %p64, %p65
      %p67 = scmp.ne.s32.totalorder %s58, %s59
      %p68 = scmp.eq.s32.totalorder %s27, 0
      %p69 = por %p67, %p68
      %p70 = scmp.ne.s32.totalorder %s58, %s59
      %p71 = scmp.eq.s32.totalorder %s28, 1
      %p72 = por %p70, %p71
      %p74 = scmp.ne.s32.totalorder %s59, %s73
      %p75 = scmp.eq.s32.totalorder %s28, 0
      %p76 = por %p74, %p75
      %s78 = sadd.s32 %s77, 1
      %p81 = scmp.eq.s32.totalorder %s22, 1
      %p82 = scmp.ne.s32.totalorder %s77, %s79
      %p83 = scmp.eq.s32.totalorder %s22, 0
      %p84 = por %p82, %p83
      %p85 = scmp.ne.s32.totalorder %s77, %s79
      %p86 = scmp.eq.s32.totalorder %s27, 1
      %p87 = por %p85, %p86
      %p88 = scmp.ne.s32.totalorder %s79, %s80
      %p89 = scmp.eq.s32.totalorder %s27, 0
      %p90 = por %p88, %p89
      %p91 = scmp.ne.s32.totalorder %s79, %s80
      %p92 = scmp.eq.s32.totalorder %s28, 1
      %p93 = por %p91, %p92
      %p95 = scmp.ne.s32.totalorder %s80, %s94
      %p96 = scmp.eq.s32.totalorder %s28, 0
      %p97 = por %p95, %p96
      %s98 = ssub.s32 %s22, %s29
      %p99 = scmp.eq.s32.totalorder %s98, 0
      %s101 = sadd.s32 %s100, 1
      %s102 = scalar_select %p99, %s100, %s101
      %p105 = pneg %p99
      %p106 = scmp.eq.s32.totalorder %s22, 1
      %p107 = por %p105, %p106
      %p108 = scmp.ne.s32.totalorder %s100, %s103
      %p109 = scmp.eq.s32.totalorder %s22, 0
      %p110 = por %p108, %p109
      %p111 = scmp.ne.s32.totalorder %s100, %s103
      %p112 = scmp.eq.s32.totalorder %s27, 1
      %p113 = por %p111, %p112
      %p114 = scmp.ne.s32.totalorder %s103, %s104
      %p115 = scmp.eq.s32.totalorder %s27, 0
      %p116 = por %p114, %p115
      %p117 = scmp.ne.s32.totalorder %s103, %s104
      %p118 = scmp.eq.s32.totalorder %s28, 1
      %p119 = por %p117, %p118
      %p121 = scmp.ne.s32.totalorder %s104, %s120
      %p122 = scmp.eq.s32.totalorder %s28, 0
      %p123 = por %p121, %p122
      %s124 = ssub.s32 %s22, %s29
      %p125 = scmp.eq.s32.totalorder %s124, 0
      %s127 = sadd.s32 %s126, 1
      %s128 = scalar_select %p125, %s126, %s127
      %p131 = pneg %p125
      %p132 = scmp.eq.s32.totalorder %s22, 1
      %p133 = por %p131, %p132
      %p134 = scmp.ne.s32.totalorder %s126, %s129
      %p135 = scmp.eq.s32.totalorder %s22, 0
      %p136 = por %p134, %p135
      %p137 = scmp.ne.s32.totalorder %s126, %s129
      %p138 = scmp.eq.s32.totalorder %s27, 1
      %p139 = por %p137, %p138
      %p140 = scmp.ne.s32.totalorder %s129, %s130
      %p141 = scmp.eq.s32.totalorder %s27, 0
      %p142 = por %p140, %p141
      %p143 = scmp.ne.s32.totalorder %s129, %s130
      %p144 = scmp.eq.s32.totalorder %s28, 1
      %p145 = por %p143, %p144
      %p147 = scmp.ne.s32.totalorder %s130, %s146
      %p148 = scmp.eq.s32.totalorder %s28, 0
      %p149 = por %p147, %p148
      %s150 = ssub.s32 %s22, %s29
      %p151 = scmp.eq.s32.totalorder %s150, 0
      %s153 = sadd.s32 %s152, 1
      %s154 = scalar_select %p151, %s152, %s153
      %p157 = pneg %p151
      %p158 = scmp.eq.s32.totalorder %s22, 1
      %p159 = por %p157, %p158
      %p160 = scmp.ne.s32.totalorder %s152, %s155
      %p161 = scmp.eq.s32.totalorder %s22, 0
      %p162 = por %p160, %p161
      %p163 = scmp.ne.s32.totalorder %s152, %s155
      %p164 = scmp.eq.s32.totalorder %s27, 1
      %p165 = por %p163, %p164
      %p166 = scmp.ne.s32.totalorder %s155, %s156
      %p167 = scmp.eq.s32.totalorder %s27, 0
      %p168 = por %p166, %p167
      %p169 = scmp.ne.s32.totalorder %s155, %s156
      %p170 = scmp.eq.s32.totalorder %s28, 1
      %p171 = por %p169, %p170
      %p173 = scmp.ne.s32.totalorder %s156, %s172
      %p174 = scmp.eq.s32.totalorder %s28, 0
      %p175 = por %p173, %p174
      %p176 = scmp.le.s32.totalorder 1, %s22
      %p177 = scmp.lt.s32.totalorder %s22, 3
      %p178 = pnand %p176, %p177
      %p179 = pneg %p178
      // Predicated region
      $region9: #{tpu_custom_call.1} parent=5 // pred_check
        _
      $region10: #{tpu_custom_call.1} parent=5 // pred_check_branch
        %181 = sbr.rel (%p178) target = $region12
      $region11: #{tpu_custom_call.1} parent=5 // pred_region
        %s182 = ssub.s32 %s22, 1
        // Predicated region
        $region13: #{tpu_custom_call.1} parent=11 // pred_check
          %p183 = pneg %p69
        $region14: #{tpu_custom_call.1} parent=11 // pred_check_branch
          %185 = sbr.rel (%p183) target = $region16
        $region15: #{tpu_custom_call.1} parent=11 // pred_region
          %187 = vsyncadd [#allocation6], 0
          %s188 = sshll.u32 %s1, 4
          %s189 = int_to_ptr.hbm [resolvable:$true] %s188
          %s190 = sshll.u32 [#allocation5], 4
          %s191 = int_to_ptr.vmem [resolvable:$true] %s190
          %196 = dma.hbm_to_vmem [thread:$0]  %s189, 1536, %s191, [#allocation6], 384, 384, 24
        $region16: #{tpu_custom_call.1} parent=11 // pred_fallthru
          _
        // Predicated region
        $region17: #{tpu_custom_call.1} parent=11 // pred_check
          %p197 = pneg %p90
        $region18: #{tpu_custom_call.1} parent=11 // pred_check_branch
          %199 = sbr.rel (%p197) target = $region20
        $region19: #{tpu_custom_call.1} parent=11 // pred_region
          _
        $region20: #{tpu_custom_call.1} parent=11 // pred_fallthru
          _
      $region12: #{tpu_custom_call.1} parent=5 // pred_fallthru
        _
      %p200 = scmp.lt.s32.totalorder %s22, 2
      // Predicated region
      $region21: #{tpu_custom_call.1} parent=5 // pred_check
        %p201 = pneg %p200
      $region22: #{tpu_custom_call.1} parent=5 // pred_check_branch
        %203 = sbr.rel (%p201) target = $region24
      $region23: #{tpu_custom_call.1} parent=5 // pred_region
        // Predicated region
        $region25: #{tpu_custom_call.1} parent=23 // pred_check
          %p204 = pneg %p42
        $region26: #{tpu_custom_call.1} parent=23 // pred_check_branch
          %206 = sbr.rel (%p204) target = $region28
        $region27: #{tpu_custom_call.1} parent=23 // pred_region
          %s207 = sand.u32 %s32, 1
          %s208 = scalar_lea.sflag [#allocation3], %s207
          %s209 = sand.u32 %s32, 1
          %s210 = smul.addr %s209, 576
          %s211 = scalar_lea.vmem [#allocation2], %s210
          %213 = vsyncadd %s208, 0
          %s214 = smul.addr %s22, 72
          %s215 = smul.addr %s214, 8
          %s216 = scalar_lea.hbm %s0, %s215
          %s217 = sshll.u32 %s216, 4
          %s218 = int_to_ptr.hbm [resolvable:$true] %s217
          %s219 = sshll.u32 %s211, 4
          %s220 = int_to_ptr.vmem [resolvable:$true] %s219
          %225 = dma.hbm_to_vmem [thread:$0]  %s218, 9216, %s220, %s208, 256, 256, 16
        $region28: #{tpu_custom_call.1} parent=23 // pred_fallthru
          _
      $region24: #{tpu_custom_call.1} parent=5 // pred_fallthru
        _
      %p226 = scmp.le.s32.totalorder 1, %s22
      %p227 = scmp.lt.s32.totalorder %s22, 3
      %p228 = pnand %p226, %p227
      %p229 = pneg %p228
      // Predicated region
      $region29: #{tpu_custom_call.1} parent=5 // pred_check
        _
      $region30: #{tpu_custom_call.1} parent=5 // pred_check_branch
        %231 = sbr.rel (%p228) target = $region32
      $region31: #{tpu_custom_call.1} parent=5 // pred_region
        %s232 = ssub.s32 %s22, 1
        %s233 = sand.u32 %s35, 1
        %s234 = scalar_lea.sflag [#allocation3], %s233
        %s235 = sand.u32 %s35, 1
        %s236 = smul.addr %s235, 576
        %s237 = scalar_lea.vmem [#allocation2], %s236
        // Predicated region
        $region33: #{tpu_custom_call.1} parent=31 // pred_check
          %p238 = pneg %p48
        $region34: #{tpu_custom_call.1} parent=31 // pred_check_branch
          %240 = sbr.rel (%p238) target = $region36
        $region35: #{tpu_custom_call.1} parent=31 // pred_region
          %242 = dma.done %s234, 9216
        $region36: #{tpu_custom_call.1} parent=31 // pred_fallthru
          _
        // Predicated region
        $region37: #{tpu_custom_call.1} parent=31 // pred_check
          %p243 = pneg %p69
        $region38: #{tpu_custom_call.1} parent=31 // pred_check_branch
          %245 = sbr.rel (%p243) target = $region40
        $region39: #{tpu_custom_call.1} parent=31 // pred_region
          %247 = dma.done [#allocation6], 1536
        $region40: #{tpu_custom_call.1} parent=31 // pred_fallthru
          _
        %s248 = sand.u32 %s35, 1
        %s249 = scalar_lea.sflag [#allocation3], %s248
        %s250 = sand.u32 %s35, 1
        %s251 = smul.addr %s250, 576
        %s252 = scalar_lea.vmem [#allocation2], %s251
        %p253 = pneg %p48
        %p254 = pneg %p45
        %p255 = pneg %p69
        %p256 = pneg %p66
        %p257 = pneg %p90
        %p258 = pneg %p87
        %p259 = pneg %p116
        %p260 = pneg %p113
        %s261 = sand.u32 %s103, 1
        %s262 = scalar_lea.sflag [#allocation4], %s261
        %s263 = sand.u32 %s103, 1
        %s264 = smul.addr %s263, 32
        %s265 = scalar_lea.vmem [#allocation7], %s264
        %p266 = pneg %p142
        %p267 = pneg %p139
        %s268 = sand.u32 %s27, 1
        %s269 = scalar_lea.sflag [#allocation9], %s268
        %s270 = sand.u32 %s129, 1
        %s271 = smul.addr %s270, 32
        %s272 = scalar_lea.vmem [#allocation8], %s271
        %p273 = pneg %p168
        %p274 = pneg %p165
        %s275 = sand.u32 %s27, 1
        %s276 = scalar_lea.sflag [#allocation9], %s275
        %s277 = sand.u32 %s155, 1
        %s278 = smul.addr %s277, 32
        %s279 = scalar_lea.vmem [#allocation10], %s278
        %v280 = vld [vmem:[%s237] sm:$0xff]
        %v281 = vld [vmem:[%s237 + $0x8] sm:$0xff]
        %v282 = vld [vmem:[%s237 + $0x10] sm:$0xff]
        %v283 = vld [vmem:[%s237 + $0x18] sm:$0xff]
        %v284 = vld [vmem:[%s237 + $0x20] sm:$0xff]
        %v285 = vld [vmem:[%s237 + $0x28] sm:$0xff]
        %v286 = vld [vmem:[%s237 + $0x30] sm:$0xff]
        %v287 = vld [vmem:[%s237 + $0x38] sm:$0xff]
        %v288 = vld [vmem:[%s237 + $0x40] sm:$0xff]
        %v289 = vld [vmem:[%s237 + $0x48] sm:$0xff]
        %v290 = vld [vmem:[%s237 + $0x50] sm:$0xff]
        %v291 = vld [vmem:[%s237 + $0x58] sm:$0xff]
        %v292 = vld [vmem:[%s237 + $0x60] sm:$0xff]
        %v293 = vld [vmem:[%s237 + $0x68] sm:$0xff]
        %v294 = vld [vmem:[%s237 + $0x70] sm:$0xff]
        %v295 = vld [vmem:[%s237 + $0x78] sm:$0xff]
        %v296 = vld [vmem:[%s237 + $0x80] sm:$0xff]
        %v297 = vld [vmem:[%s237 + $0x88] sm:$0xff]
        %v298 = vld [vmem:[%s237 + $0x90] sm:$0xff]
        %v299 = vld [vmem:[%s237 + $0x98] sm:$0xff]
        %v300 = vld [vmem:[%s237 + $0xa0] sm:$0xff]
        %v301 = vld [vmem:[%s237 + $0xa8] sm:$0xff]
        %v302 = vld [vmem:[%s237 + $0xb0] sm:$0xff]
        %v303 = vld [vmem:[%s237 + $0xb8] sm:$0xff]
        %v304 = vld [vmem:[%s237 + $0xc0] sm:$0xff]
        %v305 = vld [vmem:[%s237 + $0xc8] sm:$0xff]
        %v306 = vld [vmem:[%s237 + $0xd0] sm:$0xff]
        %v307 = vld [vmem:[%s237 + $0xd8] sm:$0xff]
        %v308 = vld [vmem:[%s237 + $0xe0] sm:$0xff]
        %v309 = vld [vmem:[%s237 + $0xe8] sm:$0xff]
        %v310 = vld [vmem:[%s237 + $0xf0] sm:$0xff]
        %v311 = vld [vmem:[%s237 + $0xf8] sm:$0xff]
        %v312 = vld [vmem:[%s237 + $0x100] sm:$0xff]
        %v313 = vld [vmem:[%s237 + $0x108] sm:$0xff]
        %v314 = vld [vmem:[%s237 + $0x110] sm:$0xff]
        %v315 = vld [vmem:[%s237 + $0x118] sm:$0xff]
        %v316 = vld [vmem:[%s237 + $0x120] sm:$0xff]
        %v317 = vld [vmem:[%s237 + $0x128] sm:$0xff]
        %v318 = vld [vmem:[%s237 + $0x130] sm:$0xff]
        %v319 = vld [vmem:[%s237 + $0x138] sm:$0xff]
        %v320 = vld [vmem:[%s237 + $0x140] sm:$0xff]
        %v321 = vld [vmem:[%s237 + $0x148] sm:$0xff]
        %v322 = vld [vmem:[%s237 + $0x150] sm:$0xff]
        %v323 = vld [vmem:[%s237 + $0x158] sm:$0xff]
        %v324 = vld [vmem:[%s237 + $0x160] sm:$0xff]
        %v325 = vld [vmem:[%s237 + $0x168] sm:$0xff]
        %v326 = vld [vmem:[%s237 + $0x170] sm:$0xff]
        %v327 = vld [vmem:[%s237 + $0x178] sm:$0xff]
        %v328 = vld [vmem:[%s237 + $0x180] sm:$0xff]
        %v329 = vld [vmem:[%s237 + $0x188] sm:$0xff]
        %v330 = vld [vmem:[%s237 + $0x190] sm:$0xff]
        %v331 = vld [vmem:[%s237 + $0x198] sm:$0xff]
        %v332 = vld [vmem:[%s237 + $0x1a0] sm:$0xff]
        %v333 = vld [vmem:[%s237 + $0x1a8] sm:$0xff]
        %v334 = vld [vmem:[%s237 + $0x1b0] sm:$0xff]
        %v335 = vld [vmem:[%s237 + $0x1b8] sm:$0xff]
        %v336 = vld [vmem:[%s237 + $0x1c0] sm:$0xff]
        %v337 = vld [vmem:[%s237 + $0x1c8] sm:$0xff]
        %v338 = vld [vmem:[%s237 + $0x1d0] sm:$0xff]
        %v339 = vld [vmem:[%s237 + $0x1d8] sm:$0xff]
        %v340 = vld [vmem:[%s237 + $0x1e0] sm:$0xff]
        %v341 = vld [vmem:[%s237 + $0x1e8] sm:$0xff]
        %v342 = vld [vmem:[%s237 + $0x1f0] sm:$0xff]
        %v343 = vld [vmem:[%s237 + $0x1f8] sm:$0xff]
        %v344 = vld [vmem:[%s237 + $0x200] sm:$0xff]
        %v345 = vld [vmem:[%s237 + $0x208] sm:$0xff]
        %v346 = vld [vmem:[%s237 + $0x210] sm:$0xff]
        %v347 = vld [vmem:[%s237 + $0x218] sm:$0xff]
        %v348 = vld [vmem:[%s237 + $0x220] sm:$0xff]
        %v349 = vld [vmem:[%s237 + $0x228] sm:$0xff]
        %v350 = vld [vmem:[%s237 + $0x230] sm:$0xff]
        %v351 = vld [vmem:[%s237 + $0x238] sm:$0xff]
        %v352 = vld [vmem:[#allocation5] sm:$0xff]
        %v353 = vld [vmem:[#allocation5 + $0x8] sm:$0xff]
        %v354 = vld [vmem:[#allocation5 + $0x10] sm:$0xff]
        %v355 = vld [vmem:[#allocation5 + $0x18] sm:$0xff]
        %v356 = vld [vmem:[#allocation5 + $0x20] sm:$0xff]
        %v357 = vld [vmem:[#allocation5 + $0x28] sm:$0xff]
        %v358 = vld [vmem:[#allocation5 + $0x30] sm:$0xff]
        %v359 = vld [vmem:[#allocation5 + $0x38] sm:$0xff]
        %v360 = vld [vmem:[#allocation5 + $0x40] sm:$0xff]
        %v361 = vld [vmem:[#allocation5 + $0x48] sm:$0xff]
        %v362 = vld [vmem:[#allocation5 + $0x50] sm:$0xff]
        %v363 = vld [vmem:[#allocation5 + $0x58] sm:$0xff]
        %v364 = vld [vmem:[%s2] sm:$0xff]
        %v365 = vld [vmem:[%s2 + $0x8] sm:$0xff]
        %v366 = vld [vmem:[%s2 + $0x10] sm:$0xff]
        %v367 = vld [vmem:[%s2 + $0x18] sm:$0xff]
        %369 = vset.pattern.permute.xlu0 0
        %370 = vperm.xlu0 %369, %v364
        %v371 = vpop.permute.xlu0 %370
        %374 = vset.pattern.permute.xlu0 0
        %375 = vperm.xlu0 %374, %v365
        %v376 = vpop.permute.xlu0 %375
        %379 = vset.pattern.permute.xlu0 0
        %380 = vperm.xlu0 %379, %v366
        %v381 = vpop.permute.xlu0 %380
        %384 = vset.pattern.permute.xlu0 0
        %385 = vperm.xlu0 %384, %v367
        %v386 = vpop.permute.xlu0 %385
        %vm388 = vcmask 261120
        %v390 = vsel %vm388, %v354, 0
        %v393 = vsel %vm388, %v357, 0
        %v396 = vsel %vm388, %v360, 0
        %v399 = vsel %vm388, %v363, 0
        %401 = vmatpush.msra.mxu0 %v310
        %402 = vmatpush.msra.mxu0 %v308
        %403 = vmatpush.msra.mxu0 %v306
        %404 = vmatpush.msra.mxu0 %v304
        %405 = vmatpush.msra.mxu0 %v302
        %406 = vmatpush.msra.mxu0 %v300
        %407 = vmatpush.msra.mxu0 %v298
        %408 = vmatpush.msra.mxu0 %v296
        %409 = vmatpush.msra.mxu0 %v294
        %410 = vmatpush.msra.mxu0 %v292
        %411 = vmatpush.msra.mxu0 %v290
        %412 = vmatpush.msra.mxu0 %v288
        %413 = vmatpush.msra.mxu0 %v286
        %414 = vmatpush.msra.mxu0 %v284
        %415 = vmatpush.msra.mxu0 %v282
        %416 = vmatpush.msra.mxu0 %v280
        %417 = vmatmul.f32.gmra.mxu0 %v352
        %v418 = vpop.f32.mrf.mxu0
        %v419 = vadd.f32 %v371, %v418
        %420 = vmatmul.f32.gmra.mxu0 %v355
        %v421 = vpop.f32.mrf.mxu0
        %v422 = vadd.f32 %v376, %v421
        %423 = vmatmul.f32.gmra.mxu0 %v358
        %v424 = vpop.f32.mrf.mxu0
        %v425 = vadd.f32 %v381, %v424
        %426 = vmatmul.f32.gmra.mxu0 %v361
        %v427 = vpop.f32.mrf.mxu0
        %v428 = vadd.f32 %v386, %v427
        %429 = vdwg.mxu0
        %430 = vmatpush.msra.mxu0 %v342
        %431 = vmatpush.msra.mxu0 %v340
        %432 = vmatpush.msra.mxu0 %v338
        %433 = vmatpush.msra.mxu0 %v336
        %434 = vmatpush.msra.mxu0 %v334
        %435 = vmatpush.msra.mxu0 %v332
        %436 = vmatpush.msra.mxu0 %v330
        %437 = vmatpush.msra.mxu0 %v328
        %438 = vmatpush.msra.mxu0 %v326
        %439 = vmatpush.msra.mxu0 %v324
        %440 = vmatpush.msra.mxu0 %v322
        %441 = vmatpush.msra.mxu0 %v320
        %442 = vmatpush.msra.mxu0 %v318
        %443 = vmatpush.msra.mxu0 %v316
        %444 = vmatpush.msra.mxu0 %v314
        %445 = vmatpush.msra.mxu0 %v312
        %446 = vmatmul.f32.gmra.mxu0 %v353
        %v447 = vpop.f32.mrf.mxu0
        %v448 = vadd.f32 %v419, %v447
        %449 = vmatmul.f32.gmra.mxu0 %v356
        %v450 = vpop.f32.mrf.mxu0
        %v451 = vadd.f32 %v422, %v450
        %452 = vmatmul.f32.gmra.mxu0 %v359
        %v453 = vpop.f32.mrf.mxu0
        %v454 = vadd.f32 %v425, %v453
        %455 = vmatmul.f32.gmra.mxu0 %v362
        %v456 = vpop.f32.mrf.mxu0
        %v457 = vadd.f32 %v428, %v456
        %458 = vdwg.mxu0
        %459 = vmatpush.msra.mxu0 0.0
        %460 = vmatpush.msra.mxu0 0.0
        %461 = vmatpush.msra.mxu0 0.0
        %462 = vmatpush.msra.mxu0 0.0
        %463 = vmatpush.msra.mxu0 0.0
        %464 = vmatpush.msra.mxu0 0.0
        %465 = vmatpush.msra.mxu0 0.0
        %466 = vmatpush.msra.mxu0 0.0
        %467 = vmatpush.msra.mxu0 0.0
        %468 = vmatpush.msra.mxu0 0.0
        %469 = vmatpush.msra.mxu0 0.0
        %470 = vmatpush.msra.mxu0 0.0
        %471 = vmatpush.msra.mxu0 %v350
        %472 = vmatpush.msra.mxu0 %v348
        %473 = vmatpush.msra.mxu0 %v346
        %474 = vmatpush.msra.mxu0 %v344
        %475 = vmatmul.f32.gmra.mxu0 %v390
        %v476 = vpop.f32.mrf.mxu0
        %v477 = vadd.f32 %v448, %v476
        %478 = vmatmul.f32.gmra.mxu0 %v393
        %v479 = vpop.f32.mrf.mxu0
        %v480 = vadd.f32 %v451, %v479
        %481 = vmatmul.f32.gmra.mxu0 %v396
        %v482 = vpop.f32.mrf.mxu0
        %v483 = vadd.f32 %v454, %v482
        %484 = vmatmul.f32.gmra.mxu0 %v399
        %v485 = vpop.f32.mrf.mxu0
        %v486 = vadd.f32 %v457, %v485
        %487 = vdwg.mxu0
        %488 = vmatpush.msra.mxu0 %v311
        %489 = vmatpush.msra.mxu0 %v309
        %490 = vmatpush.msra.mxu0 %v307
        %491 = vmatpush.msra.mxu0 %v305
        %492 = vmatpush.msra.mxu0 %v303
        %493 = vmatpush.msra.mxu0 %v301
        %494 = vmatpush.msra.mxu0 %v299
        %495 = vmatpush.msra.mxu0 %v297
        %496 = vmatpush.msra.mxu0 %v295
        %497 = vmatpush.msra.mxu0 %v293
        %498 = vmatpush.msra.mxu0 %v291
        %499 = vmatpush.msra.mxu0 %v289
        %500 = vmatpush.msra.mxu0 %v287
        %501 = vmatpush.msra.mxu0 %v285
        %502 = vmatpush.msra.mxu0 %v283
        %503 = vmatpush.msra.mxu0 %v281
        %504 = vmatmul.f32.gmra.mxu0 %v352
        %v505 = vpop.f32.mrf.mxu0
        %v506 = vadd.f32 %v371, %v505
        %507 = vmatmul.f32.gmra.mxu0 %v355
        %v508 = vpop.f32.mrf.mxu0
        %v509 = vadd.f32 %v376, %v508
        %510 = vmatmul.f32.gmra.mxu0 %v358
        %v511 = vpop.f32.mrf.mxu0
        %v512 = vadd.f32 %v381, %v511
        %513 = vmatmul.f32.gmra.mxu0 %v361
        %v514 = vpop.f32.mrf.mxu0
        %v515 = vadd.f32 %v386, %v514
        %516 = vdwg.mxu0
        %517 = vmatpush.msra.mxu0 %v343
        %518 = vmatpush.msra.mxu0 %v341
        %519 = vmatpush.msra.mxu0 %v339
        %520 = vmatpush.msra.mxu0 %v337
        %521 = vmatpush.msra.mxu0 %v335
        %522 = vmatpush.msra.mxu0 %v333
        %523 = vmatpush.msra.mxu0 %v331
        %524 = vmatpush.msra.mxu0 %v329
        %525 = vmatpush.msra.mxu0 %v327
        %526 = vmatpush.msra.mxu0 %v325
        %527 = vmatpush.msra.mxu0 %v323
        %528 = vmatpush.msra.mxu0 %v321
        %529 = vmatpush.msra.mxu0 %v319
        %530 = vmatpush.msra.mxu0 %v317
        %531 = vmatpush.msra.mxu0 %v315
        %532 = vmatpush.msra.mxu0 %v313
        %533 = vmatmul.f32.gmra.mxu0 %v353
        %v534 = vpop.f32.mrf.mxu0
        %v535 = vadd.f32 %v506, %v534
        %536 = vmatmul.f32.gmra.mxu0 %v356
        %v537 = vpop.f32.mrf.mxu0
        %v538 = vadd.f32 %v509, %v537
        %539 = vmatmul.f32.gmra.mxu0 %v359
        %v540 = vpop.f32.mrf.mxu0
        %v541 = vadd.f32 %v512, %v540
        %542 = vmatmul.f32.gmra.mxu0 %v362
        %v543 = vpop.f32.mrf.mxu0
        %v544 = vadd.f32 %v515, %v543
        %545 = vdwg.mxu0
        %546 = vmatpush.msra.mxu0 0.0
        %547 = vmatpush.msra.mxu0 0.0
        %548 = vmatpush.msra.mxu0 0.0
        %549 = vmatpush.msra.mxu0 0.0
        %550 = vmatpush.msra.mxu0 0.0
        %551 = vmatpush.msra.mxu0 0.0
        %552 = vmatpush.msra.mxu0 0.0
        %553 = vmatpush.msra.mxu0 0.0
        %554 = vmatpush.msra.mxu0 0.0
        %555 = vmatpush.msra.mxu0 0.0
        %556 = vmatpush.msra.mxu0 0.0
        %557 = vmatpush.msra.mxu0 0.0
        %558 = vmatpush.msra.mxu0 %v351
        %559 = vmatpush.msra.mxu0 %v349
        %560 = vmatpush.msra.mxu0 %v347
        %561 = vmatpush.msra.mxu0 %v345
        %562 = vmatmul.f32.gmra.mxu0 %v390
        %v563 = vpop.f32.mrf.mxu0
        %v564 = vadd.f32 %v535, %v563
        %565 = vmatmul.f32.gmra.mxu0 %v393
        %v566 = vpop.f32.mrf.mxu0
        %v567 = vadd.f32 %v538, %v566
        %568 = vmatmul.f32.gmra.mxu0 %v396
        %v569 = vpop.f32.mrf.mxu0
        %v570 = vadd.f32 %v541, %v569
        %571 = vmatmul.f32.gmra.mxu0 %v399
        %v572 = vpop.f32.mrf.mxu0
        %v573 = vadd.f32 %v544, %v572
        %574 = vdwg.mxu0
        %vm575 = vcmp.ge.f32.partialorder %v477, 0.0
        %vm576 = vcmp.ge.f32.partialorder %v564, 0.0
        %vm577 = vcmp.ge.f32.partialorder %v480, 0.0
        %vm578 = vcmp.ge.f32.partialorder %v567, 0.0
        %vm579 = vcmp.ge.f32.partialorder %v483, 0.0
        %vm580 = vcmp.ge.f32.partialorder %v570, 0.0
        %vm581 = vcmp.ge.f32.partialorder %v486, 0.0
        %vm582 = vcmp.ge.f32.partialorder %v573, 0.0
        %v583 = vmul.f32 %v477, 0.2
        %v584 = vmul.f32 %v564, 0.2
        %v585 = vmul.f32 %v480, 0.2
        %v586 = vmul.f32 %v567, 0.2
        %v587 = vmul.f32 %v483, 0.2
        %v588 = vmul.f32 %v570, 0.2
        %v589 = vmul.f32 %v486, 0.2
        %v590 = vmul.f32 %v573, 0.2
        %v591 = vsel %vm575, %v477, %v583
        %v592 = vsel %vm576, %v564, %v584
        %v593 = vsel %vm577, %v480, %v585
        %v594 = vsel %vm578, %v567, %v586
        %v595 = vsel %vm579, %v483, %v587
        %v596 = vsel %vm580, %v570, %v588
        %v597 = vsel %vm581, %v486, %v589
        %v598 = vsel %vm582, %v573, %v590
        %v599 = vsub.f32 %v591, %v595
        %v600 = vsub.f32 %v592, %v596
        %v601 = vsub.f32 %v593, %v597
        %v602 = vsub.f32 %v594, %v598
        %v603 = vsub.f32 0.0, %v599
        %v604 = vsub.f32 0.0, %v600
        %v605 = vsub.f32 0.0, %v601
        %v606 = vsub.f32 0.0, %v602
        %v607 = vmul.f32 %v603, 1.442695
        %v608 = vpow.pop %v607
        %v609 = vmul.f32 %v604, 1.442695
        %v610 = vpow.pop %v609
        %v611 = vmul.f32 %v605, 1.442695
        %v612 = vpow.pop %v611
        %v613 = vmul.f32 %v606, 1.442695
        %v614 = vpow.pop %v613
        %v615 = vadd.f32 %v608, 1.0
        %v616 = vadd.f32 %v610, 1.0
        %v617 = vadd.f32 %v612, 1.0
        %v618 = vadd.f32 %v614, 1.0
        %v619 = vrcp.pop %v615
        %v620 = vmul.f32 %v615, %v619
        %v621 = vsub.f32 1.0, %v620
        %v622 = vmul.f32 %v619, %v621
        %v623 = vadd.f32 %v619, %v622
        %vm624 = vweird.f32 %v615
        %vm625 = vweird.f32 %v619
        %vm626 = vmor %vm624, %vm625
        %v627 = vsel %vm626, %v619, %v623
        %v628 = vand.u32 2147483647, %v615
        %vm629 = vcmp.eq.f32.partialorder %v628, 8.507059e+37
        %v630 = vand.u32 %v615, 2147483648
        %v631 = vor.u32 1.1754944e-38, %v630
        %v632 = vsel %vm629, %v631, %v627
        %v633 = vmul.f32 1.0, %v632
        %v634 = vrcp.pop %v616
        %v635 = vmul.f32 %v616, %v634
        %v636 = vsub.f32 1.0, %v635
        %v637 = vmul.f32 %v634, %v636
        %v638 = vadd.f32 %v634, %v637
        %vm639 = vweird.f32 %v616
        %vm640 = vweird.f32 %v634
        %vm641 = vmor %vm639, %vm640
        %v642 = vsel %vm641, %v634, %v638
        %v643 = vand.u32 2147483647, %v616
        %vm644 = vcmp.eq.f32.partialorder %v643, 8.507059e+37
        %v645 = vand.u32 %v616, 2147483648
        %v646 = vor.u32 1.1754944e-38, %v645
        %v647 = vsel %vm644, %v646, %v642
        %v648 = vmul.f32 1.0, %v647
        %v649 = vrcp.pop %v617
        %v650 = vmul.f32 %v617, %v649
        %v651 = vsub.f32 1.0, %v650
        %v652 = vmul.f32 %v649, %v651
        %v653 = vadd.f32 %v649, %v652
        %vm654 = vweird.f32 %v617
        %vm655 = vweird.f32 %v649
        %vm656 = vmor %vm654, %vm655
        %v657 = vsel %vm656, %v649, %v653
        %v658 = vand.u32 2147483647, %v617
        %vm659 = vcmp.eq.f32.partialorder %v658, 8.507059e+37
        %v660 = vand.u32 %v617, 2147483648
        %v661 = vor.u32 1.1754944e-38, %v660
        %v662 = vsel %vm659, %v661, %v657
        %v663 = vmul.f32 1.0, %v662
        %v664 = vrcp.pop %v618
        %v665 = vmul.f32 %v618, %v664
        %v666 = vsub.f32 1.0, %v665
        %v667 = vmul.f32 %v664, %v666
        %v668 = vadd.f32 %v664, %v667
        %vm669 = vweird.f32 %v618
        %vm670 = vweird.f32 %v664
        %vm671 = vmor %vm669, %vm670
        %v672 = vsel %vm671, %v664, %v668
        %v673 = vand.u32 2147483647, %v618
        %vm674 = vcmp.eq.f32.partialorder %v673, 8.507059e+37
        %v675 = vand.u32 %v618, 2147483648
        %v676 = vor.u32 1.1754944e-38, %v675
        %v677 = vsel %vm674, %v676, %v672
        %v678 = vmul.f32 1.0, %v677
        %v679 = vld [vmem:[%s237 + $0x80] sm:$0xff]
        %v680 = vld [vmem:[%s237 + $0x88] sm:$0xff]
        %v681 = vld [vmem:[%s237 + $0x90] sm:$0xff]
        %v682 = vld [vmem:[%s237 + $0x98] sm:$0xff]
        %v683 = vmul.f32 %v679, %v633
        %v684 = vmul.f32 %v680, %v648
        %v685 = vmul.f32 %v681, %v663
        %v686 = vmul.f32 %v682, %v678
        %v687 = vsub.f32 %v679, %v683
        %v688 = vsub.f32 %v680, %v684
        %v689 = vsub.f32 %v681, %v685
        %v690 = vsub.f32 %v682, %v686
        %v691 = vadd.f32 %v687, %v688
        %692 = vadd.xlane.f32.xlu0 %v691
        %v693 = vpop.xlane.xlu0 %692
        %v694 = vadd.f32 %v689, %v690
        %695 = vadd.xlane.f32.xlu0 %v694
        %v696 = vpop.xlane.xlu0 %695
        %v697 = vrcp.pop 256.0
        %v698 = vmul.f32 256.0, %v697
        %v699 = vsub.f32 1.0, %v698
        %v700 = vmul.f32 %v697, %v699
        %v701 = vadd.f32 %v697, %v700
        %vm702 = vweird.f32 %v697
        %v703 = vsel %vm702, %v697, %v701
        %v704 = vmul.f32 %v693, %v703
        %v705 = vmul.f32 %v696, %v703
        %v706 = vsub.f32 %v687, %v704
        %v707 = vsub.f32 %v688, %v704
        %v708 = vsub.f32 %v689, %v705
        %v709 = vsub.f32 %v690, %v705
        %v710 = vmul.f32 %v706, %v706
        %v711 = vmul.f32 %v707, %v707
        %v712 = vmul.f32 %v708, %v708
        %v713 = vmul.f32 %v709, %v709
        %v714 = vadd.f32 %v710, %v711
        %715 = vadd.xlane.f32.xlu0 %v714
        %v716 = vpop.xlane.xlu0 %715
        %v717 = vadd.f32 %v712, %v713
        %718 = vadd.xlane.f32.xlu0 %v717
        %v719 = vpop.xlane.xlu0 %718
        %v720 = vmul.f32 %v716, 0.003921569
        %v721 = vmul.f32 %v719, 0.003921569
        %v722 = vadd.f32 %v720, 0.0001
        %v723 = vadd.f32 %v721, 0.0001
        %v724 = vmul.f32 %v722, 4.0
        %v725 = vmul.f32 %v723, 4.0
        %v726 = vrcp.pop %v724
        %v727 = vmul.f32 %v724, %v726
        %v728 = vsub.f32 1.0, %v727
        %v729 = vmul.f32 %v726, %v728
        %v730 = vadd.f32 %v726, %v729
        %vm731 = vweird.f32 %v724
        %vm732 = vweird.f32 %v726
        %vm733 = vmor %vm731, %vm732
        %v734 = vsel %vm733, %v726, %v730
        %v735 = vand.u32 2147483647, %v724
        %vm736 = vcmp.eq.f32.partialorder %v735, 8.507059e+37
        %v737 = vand.u32 %v724, 2147483648
        %v738 = vor.u32 1.1754944e-38, %v737
        %v739 = vsel %vm736, %v738, %v734
        %v740 = vmul.f32 1.0, %v739
        %v741 = vrcp.pop %v725
        %v742 = vmul.f32 %v725, %v741
        %v743 = vsub.f32 1.0, %v742
        %v744 = vmul.f32 %v741, %v743
        %v745 = vadd.f32 %v741, %v744
        %vm746 = vweird.f32 %v725
        %vm747 = vweird.f32 %v741
        %vm748 = vmor %vm746, %vm747
        %v749 = vsel %vm748, %v741, %v745
        %v750 = vand.u32 2147483647, %v725
        %vm751 = vcmp.eq.f32.partialorder %v750, 8.507059e+37
        %v752 = vand.u32 %v725, 2147483648
        %v753 = vor.u32 1.1754944e-38, %v752
        %v754 = vsel %vm751, %v753, %v749
        %v755 = vmul.f32 1.0, %v754
        %v756 = vmul.f32 %v710, %v740
        %v757 = vmul.f32 %v711, %v740
        %v758 = vmul.f32 %v712, %v755
        %v759 = vmul.f32 %v713, %v755
        %v760 = vadd.f32 %v756, 0.5
        %v761 = vadd.f32 %v757, 0.5
        %v762 = vadd.f32 %v758, 0.5
        %v763 = vadd.f32 %v759, 0.5
        %v764 = vsub.f32 0.0, %v760
        %v765 = vsub.f32 0.0, %v761
        %v766 = vsub.f32 0.0, %v762
        %v767 = vsub.f32 0.0, %v763
        %v768 = vmul.f32 %v764, 1.442695
        %v769 = vpow.pop %v768
        %v770 = vmul.f32 %v765, 1.442695
        %v771 = vpow.pop %v770
        %v772 = vmul.f32 %v766, 1.442695
        %v773 = vpow.pop %v772
        %v774 = vmul.f32 %v767, 1.442695
        %v775 = vpow.pop %v774
        %v776 = vadd.f32 %v769, 1.0
        %v777 = vadd.f32 %v771, 1.0
        %v778 = vadd.f32 %v773, 1.0
        %v779 = vadd.f32 %v775, 1.0
        %v780 = vrcp.pop %v776
        %v781 = vmul.f32 %v776, %v780
        %v782 = vsub.f32 1.0, %v781
        %v783 = vmul.f32 %v780, %v782
        %v784 = vadd.f32 %v780, %v783
        %vm785 = vweird.f32 %v776
        %vm786 = vweird.f32 %v780
        %vm787 = vmor %vm785, %vm786
        %v788 = vsel %vm787, %v780, %v784
        %v789 = vand.u32 2147483647, %v776
        %vm790 = vcmp.eq.f32.partialorder %v789, 8.507059e+37
        %v791 = vand.u32 %v776, 2147483648
        %v792 = vor.u32 1.1754944e-38, %v791
        %v793 = vsel %vm790, %v792, %v788
        %v794 = vmul.f32 1.0, %v793
        %v795 = vrcp.pop %v777
        %v796 = vmul.f32 %v777, %v795
        %v797 = vsub.f32 1.0, %v796
        %v798 = vmul.f32 %v795, %v797
        %v799 = vadd.f32 %v795, %v798
        %vm800 = vweird.f32 %v777
        %vm801 = vweird.f32 %v795
        %vm802 = vmor %vm800, %vm801
        %v803 = vsel %vm802, %v795, %v799
        %v804 = vand.u32 2147483647, %v777
        %vm805 = vcmp.eq.f32.partialorder %v804, 8.507059e+37
        %v806 = vand.u32 %v777, 2147483648
        %v807 = vor.u32 1.1754944e-38, %v806
        %v808 = vsel %vm805, %v807, %v803
        %v809 = vmul.f32 1.0, %v808
        %v810 = vrcp.pop %v778
        %v811 = vmul.f32 %v778, %v810
        %v812 = vsub.f32 1.0, %v811
        %v813 = vmul.f32 %v810, %v812
        %v814 = vadd.f32 %v810, %v813
        %vm815 = vweird.f32 %v778
        %vm816 = vweird.f32 %v810
        %vm817 = vmor %vm815, %vm816
        %v818 = vsel %vm817, %v810, %v814
        %v819 = vand.u32 2147483647, %v778
        %vm820 = vcmp.eq.f32.partialorder %v819, 8.507059e+37
        %v821 = vand.u32 %v778, 2147483648
        %v822 = vor.u32 1.1754944e-38, %v821
        %v823 = vsel %vm820, %v822, %v818
        %v824 = vmul.f32 1.0, %v823
        %v825 = vrcp.pop %v779
        %v826 = vmul.f32 %v779, %v825
        %v827 = vsub.f32 1.0, %v826
        %v828 = vmul.f32 %v825, %v827
        %v829 = vadd.f32 %v825, %v828
        %vm830 = vweird.f32 %v779
        %vm831 = vweird.f32 %v825
        %vm832 = vmor %vm830, %vm831
        %v833 = vsel %vm832, %v825, %v829
        %v834 = vand.u32 2147483647, %v779
        %vm835 = vcmp.eq.f32.partialorder %v834, 8.507059e+37
        %v836 = vand.u32 %v779, 2147483648
        %v837 = vor.u32 1.1754944e-38, %v836
        %v838 = vsel %vm835, %v837, %v833
        %v839 = vmul.f32 1.0, %v838
        %v840 = vmul.f32 %v794, %v683
        %v841 = vmul.f32 %v809, %v684
        %v842 = vmul.f32 %v824, %v685
        %v843 = vmul.f32 %v839, %v686
        %v844 = vadd.f32 %v840, %v841
        %845 = vadd.xlane.f32.xlu0 %v844
        %v846 = vpop.xlane.xlu0 %845
        %v847 = vadd.f32 %v842, %v843
        %848 = vadd.xlane.f32.xlu0 %v847
        %v849 = vpop.xlane.xlu0 %848
        %v850 = vmul.f32 %v846, %v703
        %v851 = vmul.f32 %v849, %v703
        %v852 = vsub.f32 %v840, %v850
        %v853 = vsub.f32 %v841, %v850
        %v854 = vsub.f32 %v842, %v851
        %v855 = vsub.f32 %v843, %v851
        %v856 = vmul.f32 %v852, %v852
        %v857 = vmul.f32 %v853, %v853
        %v858 = vmul.f32 %v854, %v854
        %v859 = vmul.f32 %v855, %v855
        %v860 = vadd.f32 %v856, %v857
        %861 = vadd.xlane.f32.xlu0 %v860
        %v862 = vpop.xlane.xlu0 %861
        %v863 = vadd.f32 %v858, %v859
        %864 = vadd.xlane.f32.xlu0 %v863
        %v865 = vpop.xlane.xlu0 %864
        %v866 = vmul.f32 %v862, 0.003921569
        %v867 = vmul.f32 %v865, 0.003921569
        %v868 = vadd.f32 %v866, 0.0001
        %v869 = vadd.f32 %v867, 0.0001
        %v870 = vmul.f32 %v868, 4.0
        %v871 = vmul.f32 %v869, 4.0
        %v872 = vrcp.pop %v870
        %v873 = vmul.f32 %v870, %v872
        %v874 = vsub.f32 1.0, %v873
        %v875 = vmul.f32 %v872, %v874
        %v876 = vadd.f32 %v872, %v875
        %vm877 = vweird.f32 %v870
        %vm878 = vweird.f32 %v872
        %vm879 = vmor %vm877, %vm878
        %v880 = vsel %vm879, %v872, %v876
        %v881 = vand.u32 2147483647, %v870
        %vm882 = vcmp.eq.f32.partialorder %v881, 8.507059e+37
        %v883 = vand.u32 %v870, 2147483648
        %v884 = vor.u32 1.1754944e-38, %v883
        %v885 = vsel %vm882, %v884, %v880
        %v886 = vmul.f32 1.0, %v885
        %v887 = vrcp.pop %v871
        %v888 = vmul.f32 %v871, %v887
        %v889 = vsub.f32 1.0, %v888
        %v890 = vmul.f32 %v887, %v889
        %v891 = vadd.f32 %v887, %v890
        %vm892 = vweird.f32 %v871
        %vm893 = vweird.f32 %v887
        %vm894 = vmor %vm892, %vm893
        %v895 = vsel %vm894, %v887, %v891
        %v896 = vand.u32 2147483647, %v871
        %vm897 = vcmp.eq.f32.partialorder %v896, 8.507059e+37
        %v898 = vand.u32 %v871, 2147483648
        %v899 = vor.u32 1.1754944e-38, %v898
        %v900 = vsel %vm897, %v899, %v895
        %v901 = vmul.f32 1.0, %v900
        %v902 = vmul.f32 %v856, %v886
        %v903 = vmul.f32 %v857, %v886
        %v904 = vmul.f32 %v858, %v901
        %v905 = vmul.f32 %v859, %v901
        %v906 = vadd.f32 %v902, 0.5
        %v907 = vadd.f32 %v903, 0.5
        %v908 = vadd.f32 %v904, 0.5
        %v909 = vadd.f32 %v905, 0.5
        %v910 = vsub.f32 0.0, %v906
        %v911 = vsub.f32 0.0, %v907
        %v912 = vsub.f32 0.0, %v908
        %v913 = vsub.f32 0.0, %v909
        %v914 = vmul.f32 %v910, 1.442695
        %v915 = vpow.pop %v914
        %v916 = vmul.f32 %v911, 1.442695
        %v917 = vpow.pop %v916
        %v918 = vmul.f32 %v912, 1.442695
        %v919 = vpow.pop %v918
        %v920 = vmul.f32 %v913, 1.442695
        %v921 = vpow.pop %v920
        %v922 = vadd.f32 %v915, 1.0
        %v923 = vadd.f32 %v917, 1.0
        %v924 = vadd.f32 %v919, 1.0
        %v925 = vadd.f32 %v921, 1.0
        %v926 = vrcp.pop %v922
        %v927 = vmul.f32 %v922, %v926
        %v928 = vsub.f32 1.0, %v927
        %v929 = vmul.f32 %v926, %v928
        %v930 = vadd.f32 %v926, %v929
        %vm931 = vweird.f32 %v922
        %vm932 = vweird.f32 %v926
        %vm933 = vmor %vm931, %vm932
        %v934 = vsel %vm933, %v926, %v930
        %v935 = vand.u32 2147483647, %v922
        %vm936 = vcmp.eq.f32.partialorder %v935, 8.507059e+37
        %v937 = vand.u32 %v922, 2147483648
        %v938 = vor.u32 1.1754944e-38, %v937
        %v939 = vsel %vm936, %v938, %v934
        %v940 = vmul.f32 1.0, %v939
        %v941 = vrcp.pop %v923
        %v942 = vmul.f32 %v923, %v941
        %v943 = vsub.f32 1.0, %v942
        %v944 = vmul.f32 %v941, %v943
        %v945 = vadd.f32 %v941, %v944
        %vm946 = vweird.f32 %v923
        %vm947 = vweird.f32 %v941
        %vm948 = vmor %vm946, %vm947
        %v949 = vsel %vm948, %v941, %v945
        %v950 = vand.u32 2147483647, %v923
        %vm951 = vcmp.eq.f32.partialorder %v950, 8.507059e+37
        %v952 = vand.u32 %v923, 2147483648
        %v953 = vor.u32 1.1754944e-38, %v952
        %v954 = vsel %vm951, %v953, %v949
        %v955 = vmul.f32 1.0, %v954
        %v956 = vrcp.pop %v924
        %v957 = vmul.f32 %v924, %v956
        %v958 = vsub.f32 1.0, %v957
        %v959 = vmul.f32 %v956, %v958
        %v960 = vadd.f32 %v956, %v959
        %vm961 = vweird.f32 %v924
        %vm962 = vweird.f32 %v956
        %vm963 = vmor %vm961, %vm962
        %v964 = vsel %vm963, %v956, %v960
        %v965 = vand.u32 2147483647, %v924
        %vm966 = vcmp.eq.f32.partialorder %v965, 8.507059e+37
        %v967 = vand.u32 %v924, 2147483648
        %v968 = vor.u32 1.1754944e-38, %v967
        %v969 = vsel %vm966, %v968, %v964
        %v970 = vmul.f32 1.0, %v969
        %v971 = vrcp.pop %v925
        %v972 = vmul.f32 %v925, %v971
        %v973 = vsub.f32 1.0, %v972
        %v974 = vmul.f32 %v971, %v973
        %v975 = vadd.f32 %v971, %v974
        %vm976 = vweird.f32 %v925
        %vm977 = vweird.f32 %v971
        %vm978 = vmor %vm976, %vm977
        %v979 = vsel %vm978, %v971, %v975
        %v980 = vand.u32 2147483647, %v925
        %vm981 = vcmp.eq.f32.partialorder %v980, 8.507059e+37
        %v982 = vand.u32 %v925, 2147483648
        %v983 = vor.u32 1.1754944e-38, %v982
        %v984 = vsel %vm981, %v983, %v979
        %v985 = vmul.f32 1.0, %v984
        %v986 = vmul.f32 %v940, %v683
        %v987 = vmul.f32 %v955, %v684
        %v988 = vmul.f32 %v970, %v685
        %v989 = vmul.f32 %v985, %v686
        %v990 = vadd.f32 %v986, %v987
        %991 = vadd.xlane.f32.xlu0 %v990
        %v992 = vpop.xlane.xlu0 %991
        %v993 = vadd.f32 %v988, %v989
        %994 = vadd.xlane.f32.xlu0 %v993
        %v995 = vpop.xlane.xlu0 %994
        %v996 = vmul.f32 %v992, %v703
        %v997 = vmul.f32 %v995, %v703
        %v998 = vsub.f32 %v986, %v996
        %v999 = vsub.f32 %v987, %v996
        %v1000 = vsub.f32 %v988, %v997
        %v1001 = vsub.f32 %v989, %v997
        %v1002 = vmul.f32 %v998, %v998
        %v1003 = vmul.f32 %v999, %v999
        %v1004 = vmul.f32 %v1000, %v1000
        %v1005 = vmul.f32 %v1001, %v1001
        %v1006 = vadd.f32 %v1002, %v1003
        %1007 = vadd.xlane.f32.xlu0 %v1006
        %v1008 = vpop.xlane.xlu0 %1007
        %v1009 = vadd.f32 %v1004, %v1005
        %1010 = vadd.xlane.f32.xlu0 %v1009
        %v1011 = vpop.xlane.xlu0 %1010
        %v1012 = vmul.f32 %v1008, 0.003921569
        %v1013 = vmul.f32 %v1011, 0.003921569
        %v1014 = vadd.f32 %v1012, 0.0001
        %v1015 = vadd.f32 %v1013, 0.0001
        %v1016 = vmul.f32 %v1014, 4.0
        %v1017 = vmul.f32 %v1015, 4.0
        %v1018 = vrcp.pop %v1016
        %v1019 = vmul.f32 %v1016, %v1018
        %v1020 = vsub.f32 1.0, %v1019
        %v1021 = vmul.f32 %v1018, %v1020
        %v1022 = vadd.f32 %v1018, %v1021
        %vm1023 = vweird.f32 %v1016
        %vm1024 = vweird.f32 %v1018
        %vm1025 = vmor %vm1023, %vm1024
        %v1026 = vsel %vm1025, %v1018, %v1022
        %v1027 = vand.u32 2147483647, %v1016
        %vm1028 = vcmp.eq.f32.partialorder %v1027, 8.507059e+37
        %v1029 = vand.u32 %v1016, 2147483648
        %v1030 = vor.u32 1.1754944e-38, %v1029
        %v1031 = vsel %vm1028, %v1030, %v1026
        %v1032 = vmul.f32 1.0, %v1031
        %v1033 = vrcp.pop %v1017
        %v1034 = vmul.f32 %v1017, %v1033
        %v1035 = vsub.f32 1.0, %v1034
        %v1036 = vmul.f32 %v1033, %v1035
        %v1037 = vadd.f32 %v1033, %v1036
        %vm1038 = vweird.f32 %v1017
        %vm1039 = vweird.f32 %v1033
        %vm1040 = vmor %vm1038, %vm1039
        %v1041 = vsel %vm1040, %v1033, %v1037
        %v1042 = vand.u32 2147483647, %v1017
        %vm1043 = vcmp.eq.f32.partialorder %v1042, 8.507059e+37
        %v1044 = vand.u32 %v1017, 2147483648
        %v1045 = vor.u32 1.1754944e-38, %v1044
        %v1046 = vsel %vm1043, %v1045, %v1041
        %v1047 = vmul.f32 1.0, %v1046
        %v1048 = vmul.f32 %v1002, %v1032
        %v1049 = vmul.f32 %v1003, %v1032
        %v1050 = vmul.f32 %v1004, %v1047
        %v1051 = vmul.f32 %v1005, %v1047
        %v1052 = vadd.f32 %v1048, 0.5
        %v1053 = vadd.f32 %v1049, 0.5
        %v1054 = vadd.f32 %v1050, 0.5
        %v1055 = vadd.f32 %v1051, 0.5
        %v1056 = vsub.f32 0.0, %v1052
        %v1057 = vsub.f32 0.0, %v1053
        %v1058 = vsub.f32 0.0, %v1054
        %v1059 = vsub.f32 0.0, %v1055
        %v1060 = vmul.f32 %v1056, 1.442695
        %v1061 = vpow.pop %v1060
        %v1062 = vmul.f32 %v1057, 1.442695
        %v1063 = vpow.pop %v1062
        %v1064 = vmul.f32 %v1058, 1.442695
        %v1065 = vpow.pop %v1064
        %v1066 = vmul.f32 %v1059, 1.442695
        %v1067 = vpow.pop %v1066
        %v1068 = vadd.f32 %v1061, 1.0
        %v1069 = vadd.f32 %v1063, 1.0
        %v1070 = vadd.f32 %v1065, 1.0
        %v1071 = vadd.f32 %v1067, 1.0
        %v1072 = vrcp.pop %v1068
        %v1073 = vmul.f32 %v1068, %v1072
        %v1074 = vsub.f32 1.0, %v1073
        %v1075 = vmul.f32 %v1072, %v1074
        %v1076 = vadd.f32 %v1072, %v1075
        %vm1077 = vweird.f32 %v1068
        %vm1078 = vweird.f32 %v1072
        %vm1079 = vmor %vm1077, %vm1078
        %v1080 = vsel %vm1079, %v1072, %v1076
        %v1081 = vand.u32 2147483647, %v1068
        %vm1082 = vcmp.eq.f32.partialorder %v1081, 8.507059e+37
        %v1083 = vand.u32 %v1068, 2147483648
        %v1084 = vor.u32 1.1754944e-38, %v1083
        %v1085 = vsel %vm1082, %v1084, %v1080
        %v1086 = vmul.f32 1.0, %v1085
        %v1087 = vrcp.pop %v1069
        %v1088 = vmul.f32 %v1069, %v1087
        %v1089 = vsub.f32 1.0, %v1088
        %v1090 = vmul.f32 %v1087, %v1089
        %v1091 = vadd.f32 %v1087, %v1090
        %vm1092 = vweird.f32 %v1069
        %vm1093 = vweird.f32 %v1087
        %vm1094 = vmor %vm1092, %vm1093
        %v1095 = vsel %vm1094, %v1087, %v1091
        %v1096 = vand.u32 2147483647, %v1069
        %vm1097 = vcmp.eq.f32.partialorder %v1096, 8.507059e+37
        %v1098 = vand.u32 %v1069, 2147483648
        %v1099 = vor.u32 1.1754944e-38, %v1098
        %v1100 = vsel %vm1097, %v1099, %v1095
        %v1101 = vmul.f32 1.0, %v1100
        %v1102 = vrcp.pop %v1070
        %v1103 = vmul.f32 %v1070, %v1102
        %v1104 = vsub.f32 1.0, %v1103
        %v1105 = vmul.f32 %v1102, %v1104
        %v1106 = vadd.f32 %v1102, %v1105
        %vm1107 = vweird.f32 %v1070
        %vm1108 = vweird.f32 %v1102
        %vm1109 = vmor %vm1107, %vm1108
        %v1110 = vsel %vm1109, %v1102, %v1106
        %v1111 = vand.u32 2147483647, %v1070
        %vm1112 = vcmp.eq.f32.partialorder %v1111, 8.507059e+37
        %v1113 = vand.u32 %v1070, 2147483648
        %v1114 = vor.u32 1.1754944e-38, %v1113
        %v1115 = vsel %vm1112, %v1114, %v1110
        %v1116 = vmul.f32 1.0, %v1115
        %v1117 = vrcp.pop %v1071
        %v1118 = vmul.f32 %v1071, %v1117
        %v1119 = vsub.f32 1.0, %v1118
        %v1120 = vmul.f32 %v1117, %v1119
        %v1121 = vadd.f32 %v1117, %v1120
        %vm1122 = vweird.f32 %v1071
        %vm1123 = vweird.f32 %v1117
        %vm1124 = vmor %vm1122, %vm1123
        %v1125 = vsel %vm1124, %v1117, %v1121
        %v1126 = vand.u32 2147483647, %v1071
        %vm1127 = vcmp.eq.f32.partialorder %v1126, 8.507059e+37
        %v1128 = vand.u32 %v1071, 2147483648
        %v1129 = vor.u32 1.1754944e-38, %v1128
        %v1130 = vsel %vm1127, %v1129, %v1125
        %v1131 = vmul.f32 1.0, %v1130
        %v1132 = vmul.f32 %v1086, %v683
        %v1133 = vmul.f32 %v1101, %v684
        %v1134 = vmul.f32 %v1116, %v685
        %v1135 = vmul.f32 %v1131, %v686
        %1136 = vst [vmem:[%s279] sm:$0xff] %v840
        %1137 = vst [vmem:[%s279 + $0x8] sm:$0xff] %v841
        %1138 = vst [vmem:[%s279 + $0x10] sm:$0xff] %v842
        %1139 = vst [vmem:[%s279 + $0x18] sm:$0xff] %v843
        %1140 = vst [vmem:[%s272] sm:$0xff] %v986
        %1141 = vst [vmem:[%s272 + $0x8] sm:$0xff] %v987
        %1142 = vst [vmem:[%s272 + $0x10] sm:$0xff] %v988
        %1143 = vst [vmem:[%s272 + $0x18] sm:$0xff] %v989
        %1144 = vst [vmem:[%s265] sm:$0xff] %v1132
        %1145 = vst [vmem:[%s265 + $0x8] sm:$0xff] %v1133
        %1146 = vst [vmem:[%s265 + $0x10] sm:$0xff] %v1134
        %1147 = vst [vmem:[%s265 + $0x18] sm:$0xff] %v1135
        %s1148 = sand.u32 %s103, 1
        %s1149 = scalar_lea.sflag [#allocation4], %s1148
        %s1150 = sand.u32 %s103, 1
        %s1151 = smul.addr %s1150, 32
        %s1152 = scalar_lea.vmem [#allocation7], %s1151
        %s1153 = sand.u32 %s27, 1
        %s1154 = scalar_lea.sflag [#allocation9], %s1153
        %s1155 = sand.u32 %s129, 1
        %s1156 = smul.addr %s1155, 32
        %s1157 = scalar_lea.vmem [#allocation8], %s1156
        %s1158 = sand.u32 %s27, 1
        %s1159 = scalar_lea.sflag [#allocation9], %s1158
        %s1160 = sand.u32 %s155, 1
        %s1161 = smul.addr %s1160, 32
        %s1162 = scalar_lea.vmem [#allocation10], %s1161
        // Predicated region
        $region41: #{tpu_custom_call.1} parent=31 // pred_check
          %p1163 = pneg %p113
        $region42: #{tpu_custom_call.1} parent=31 // pred_check_branch
          %1165 = sbr.rel (%p1163) target = $region44
        $region43: #{tpu_custom_call.1} parent=31 // pred_region
          %1167 = vsyncadd %s1149, 0
          %s1168 = smul.addr %s27, 4
          %s1169 = smul.addr %s1168, 8
          %s1170 = scalar_lea.hbm %s3, %s1169
          %s1171 = sshll.u32 %s1152, 4
          %s1172 = int_to_ptr.vmem [resolvable:$true] %s1171
          %s1173 = sshll.u32 %s1170, 4
          %s1174 = int_to_ptr.hbm [resolvable:$true] %s1173
          %1179 = dma.vmem_to_hbm [thread:$0]  %s1172, 512, %s1174, %s1149, 256, 256, 16
        $region44: #{tpu_custom_call.1} parent=31 // pred_fallthru
          _
        // Predicated region
        $region45: #{tpu_custom_call.1} parent=31 // pred_check
          %p1180 = pneg %p139
        $region46: #{tpu_custom_call.1} parent=31 // pred_check_branch
          %1182 = sbr.rel (%p1180) target = $region48
        $region47: #{tpu_custom_call.1} parent=31 // pred_region
          %1184 = vsyncadd %s1154, 0
          %s1185 = smul.addr %s27, 4
          %s1186 = smul.addr %s1185, 8
          %s1187 = scalar_lea.hbm %s4, %s1186
          %s1188 = sshll.u32 %s1157, 4
          %s1189 = int_to_ptr.vmem [resolvable:$true] %s1188
          %s1190 = sshll.u32 %s1187, 4
          %s1191 = int_to_ptr.hbm [resolvable:$true] %s1190
          %1196 = dma.vmem_to_hbm [thread:$0]  %s1189, 512, %s1191, %s1154, 256, 256, 16
        $region48: #{tpu_custom_call.1} parent=31 // pred_fallthru
          _
        // Predicated region
        $region49: #{tpu_custom_call.1} parent=31 // pred_check
          %p1197 = pneg %p165
        $region50: #{tpu_custom_call.1} parent=31 // pred_check_branch
          %1199 = sbr.rel (%p1197) target = $region52
        $region51: #{tpu_custom_call.1} parent=31 // pred_region
          %1201 = vsyncadd %s1159, 0
          %s1202 = smul.addr %s27, 4
          %s1203 = smul.addr %s1202, 8
          %s1204 = scalar_lea.hbm %s5, %s1203
          %s1205 = sshll.u32 %s1162, 4
          %s1206 = int_to_ptr.vmem [resolvable:$true] %s1205
          %s1207 = sshll.u32 %s1204, 4
          %s1208 = int_to_ptr.hbm [resolvable:$true] %s1207
          %1213 = dma.vmem_to_hbm [thread:$0]  %s1206, 512, %s1208, %s1159, 256, 256, 16
        $region52: #{tpu_custom_call.1} parent=31 // pred_fallthru
          _
      $region32: #{tpu_custom_call.1} parent=5 // pred_fallthru
        _
      %p1214 = scmp.le.s32.totalorder 2, %s22
      // Predicated region
      $region53: #{tpu_custom_call.1} parent=5 // pred_check
        %p1215 = pneg %p1214
      $region54: #{tpu_custom_call.1} parent=5 // pred_check_branch
        %1217 = sbr.rel (%p1215) target = $region56
      $region55: #{tpu_custom_call.1} parent=5 // pred_region
        %s1218 = ssub.s32 %s22, 2
        // Predicated region
        $region57: #{tpu_custom_call.1} parent=55 // pred_check
          %p1219 = pneg %p119
        $region58: #{tpu_custom_call.1} parent=55 // pred_check_branch
          %1221 = sbr.rel (%p1219) target = $region60
        $region59: #{tpu_custom_call.1} parent=55 // pred_region
          %s1222 = sand.u32 %s104, 1
          %s1223 = scalar_lea.sflag [#allocation4], %s1222
          %s1224 = sand.u32 %s104, 1
          %s1225 = smul.addr %s1224, 32
          %s1226 = scalar_lea.vmem [#allocation7], %s1225
          %1228 = dma.done %s1223, 512
        $region60: #{tpu_custom_call.1} parent=55 // pred_fallthru
          _
        // Predicated region
        $region61: #{tpu_custom_call.1} parent=55 // pred_check
          %p1229 = pneg %p145
        $region62: #{tpu_custom_call.1} parent=55 // pred_check_branch
          %1231 = sbr.rel (%p1229) target = $region64
        $region63: #{tpu_custom_call.1} parent=55 // pred_region
          %s1232 = sand.u32 %s28, 1
          %s1233 = scalar_lea.sflag [#allocation9], %s1232
          %s1234 = sand.u32 %s130, 1
          %s1235 = smul.addr %s1234, 32
          %s1236 = scalar_lea.vmem [#allocation8], %s1235
          %1238 = dma.done %s1233, 512
        $region64: #{tpu_custom_call.1} parent=55 // pred_fallthru
          _
        // Predicated region
        $region65: #{tpu_custom_call.1} parent=55 // pred_check
          %p1239 = pneg %p171
        $region66: #{tpu_custom_call.1} parent=55 // pred_check_branch
          %1241 = sbr.rel (%p1239) target = $region68
        $region67: #{tpu_custom_call.1} parent=55 // pred_region
          %s1242 = sand.u32 %s28, 1
          %s1243 = scalar_lea.sflag [#allocation9], %s1242
          %s1244 = sand.u32 %s156, 1
          %s1245 = smul.addr %s1244, 32
          %s1246 = scalar_lea.vmem [#allocation10], %s1245
          %1248 = dma.done %s1243, 512
        $region68: #{tpu_custom_call.1} parent=55 // pred_fallthru
          _
      $region56: #{tpu_custom_call.1} parent=5 // pred_fallthru
        _
    $region6: #{tpu_custom_call.1} parent=1 // loop_footer
      %s26 = sadd.s32 1, %s22
    $region7: #{tpu_custom_call.1} parent=1 // loop_footer_branch
      %21 = sbr.rel target = $region3
    $region8: #{tpu_custom_call.1} parent=1 // loop_exit
      _
    %1249 = vsyncpa [#allocation3], 1
    %s1250 = scalar_lea.sflag [#allocation3], 1
    %1251 = vsyncpa %s1250, 1
    %1252 = vsyncpa [#allocation6], 1
    %1253 = vsyncpa [#allocation4], 1
    %s1254 = scalar_lea.sflag [#allocation4], 1
    %1255 = vsyncpa %s1254, 1
    %1256 = vsyncpa [#allocation9], 1
    %s1257 = scalar_lea.sflag [#allocation9], 1
    %1258 = vsyncpa %s1257, 1

</llo_original>
